<compile_context>
chip_gen: v6e
topology: v6e:2x2x1
jax: 0.10.0
libtpu: 0.0.40
codegen_flags: <defaults>
</compile_context>

<pallas_src>
import jax
import jax.numpy as jnp
from jax.experimental import pallas as pl
from jax.experimental.pallas import tpu as pltpu


def position_closer_kernel(x_ref,                     # (T, B, Din) bf16
                           h_init_ref, c_init_ref,    # (L=2, B, H) f32
                           w0x_ref, w0h_ref, b0_ref,  # (Din,4H) bf16, (H,4H) bf16, (1,4H) f32
                           w1x_ref, w1h_ref, b1_ref,  # (H,4H) bf16, (H,4H) bf16, (1,4H) f32
                           w_out_ref, b_out_ref,      # (1,1,H) f32, (1,1,1) f32
                           prob_ref, hn_ref, cn_ref,  # (T,B,1), (2,B,H), (2,B,H) f32
                           h1s_ref):                  # scratch (T,B,H) f32
    T = x_ref.shape[0]
    H = hn_ref.shape[-1]

    # Loop-invariant loads.
    w0x = w0x_ref[...]
    w0h = w0h_ref[...]
    b0 = b0_ref[...]
    w1x = w1x_ref[...]
    w1h = w1h_ref[...]
    b1 = b1_ref[...]

    # Hoisted layer-0 input contribution for all T: these dots do not depend on the
    # recurrence, so in the single unrolled basic block they sit off the critical path.
    xw0 = [jnp.dot(x_ref[t], w0x, preferred_element_type=jnp.float32) + b0
           for t in range(T)]

    def fused_gates(pre, c_prev):
        # pre: packed (B, 4H) pre-activation.  One sigmoid + one tanh over the full
        # vreg, then per-gate lane slices (i, f, g, o in PyTorch order).
        sig = jax.nn.sigmoid(pre)
        tnh = jnp.tanh(pre)
        i = sig[:, 0:H]
        f = sig[:, H:2 * H]
        g = tnh[:, 2 * H:3 * H]
        o = sig[:, 3 * H:4 * H]
        c_new = f * c_prev + i * g
        h_new = o * jnp.tanh(c_new)
        return h_new, c_new

    h0 = h_init_ref[0]
    c0 = c_init_ref[0]
    h1 = h_init_ref[1]
    c1 = c_init_ref[1]

    # Fully unrolled recurrence (T is static and small).
    for t in range(T):
        # Layer 0: only the recurrent dot is on the serial chain.
        pre0 = xw0[t] + jnp.dot(h0.astype(jnp.bfloat16), w0h,
                                preferred_element_type=jnp.float32)
        h0, c0 = fused_gates(pre0, c0)

        # Layer 1: two accumulated dots (no concatenate).
        pre1 = (jnp.dot(h0.astype(jnp.bfloat16), w1x, preferred_element_type=jnp.float32)
                + jnp.dot(h1.astype(jnp.bfloat16), w1h, preferred_element_type=jnp.float32)
                + b1)
        h1, c1 = fused_gates(pre1, c1)

        # Stash h1_t; the head is applied once after the loop.
        h1s_ref[t] = h1

    hn_ref[0] = h0
    cn_ref[0] = c0
    hn_ref[1] = h1
    cn_ref[1] = c1

    # Head (Linear(H -> 1) + sigmoid) applied to all T at once: one VPU multiply, one
    # lane reduce, one sigmoid, one store.  (keepdims + (T,B,1) output kept for robust
    # lowering; it is a single store after the loop so the narrow lane width is moot.)
    h1_all = h1s_ref[...]                                              # (T, B, H) f32
    logit = jnp.sum(h1_all * w_out_ref[...], axis=-1, keepdims=True) + b_out_ref[...]
    prob_ref[...] = jax.nn.sigmoid(logit)


def position_closer_forward(x, hx, kernel_params):
    """x: (B, T, input_size) float32; hx = (h0, c0) each (num_layers, B, H).
    Returns (prob (B, T, 1), (h_n, c_n)) — matches the PyTorch module semantics."""
    B, T, _ = x.shape
    h0, c0 = hx
    L, _, H = h0.shape
    assert L == 2, "kernel is written for num_layers == 2"

    (w0x, w0h, b0), (w1x, w1h, b1), (w_out, b_out) = kernel_params
    x_tm = jnp.transpose(x, (1, 0, 2)).astype(jnp.bfloat16)            # (T, B, Din) bf16

    vmem = pl.BlockSpec(memory_space=pltpu.MemorySpace.VMEM)
    prob_tb1, hn, cn = pl.pallas_call(
        position_closer_kernel,
        out_shape=(
            jax.ShapeDtypeStruct((T, B, 1), jnp.float32),
            jax.ShapeDtypeStruct((L, B, H), jnp.float32),
            jax.ShapeDtypeStruct((L, B, H), jnp.float32),
        ),
        in_specs=[vmem] * 11,
        out_specs=(vmem, vmem, vmem),
        scratch_shapes=[pltpu.VMEM((T, B, H), jnp.float32)],
    )(x_tm, h0.astype(jnp.float32), c0.astype(jnp.float32),
      w0x, w0h, b0, w1x, w1h, b1, w_out, b_out)

    prob = jnp.transpose(prob_tb1, (1, 0, 2))                          # (B, T, 1)
    return prob, (hn, cn)


def to_kernel_params(torch_style):
    """Convert PyTorch-layout params to the packed fused-gate kernel layout:
       per layer: W_x = W_ih.T (K_in, 4H) bf16, W_h = W_hh.T (H, 4H) bf16,
                  b = b_ih + b_hh (1, 4H) f32, gate columns ordered [i|f|g|o]."""
    (w_ih0, w_hh0, b_ih0, b_hh0), (w_ih1, w_hh1, b_ih1, b_hh1), (lin_w, lin_b) = torch_style

    def layer(w_ih, w_hh, b_ih, b_hh):
        wx = w_ih.T.astype(jnp.bfloat16)                               # (K_in, 4H)
        wh = w_hh.T.astype(jnp.bfloat16)                               # (H,    4H)
        b = (b_ih + b_hh).reshape(1, -1).astype(jnp.float32)           # (1,    4H)
        return wx, wh, b

    l0 = layer(w_ih0, w_hh0, b_ih0, b_hh0)
    l1 = layer(w_ih1, w_hh1, b_ih1, b_hh1)
    H = w_hh0.shape[1]
    head = (lin_w.reshape(1, 1, H).astype(jnp.float32),
            lin_b.reshape(1, 1, 1).astype(jnp.float32))
    return l0, l1, head


def init_params(key, input_size, hidden_size):
    """Deterministic synthetic params with PyTorch LSTM/Linear shapes."""
    H = hidden_size
    scale = 1.0 / jnp.sqrt(H)
    ks = jax.random.split(key, 10)
    u = lambda k, s: jax.random.uniform(k, s, jnp.float32, -scale, scale)

    w_ih_l0, w_hh_l0 = u(ks[0], (4 * H, input_size)), u(ks[1], (4 * H, H))
    b_ih_l0, b_hh_l0 = u(ks[2], (4 * H,)), u(ks[3], (4 * H,))
    w_ih_l1, w_hh_l1 = u(ks[4], (4 * H, H)), u(ks[5], (4 * H, H))
    b_ih_l1, b_hh_l1 = u(ks[6], (4 * H,)), u(ks[7], (4 * H,))
    lin_w, lin_b = u(ks[8], (1, H)), u(ks[9], (1,))

    torch_style = ((w_ih_l0, w_hh_l0, b_ih_l0, b_hh_l0),
                   (w_ih_l1, w_hh_l1, b_ih_l1, b_hh_l1),
                   (lin_w, lin_b))
    return torch_style, to_kernel_params(torch_style)


def reference_forward(x, hx, torch_style):
    """Pure-JAX f32 reference mirroring nn.LSTM(batch_first) + Linear + sigmoid."""
    h0, c0 = hx
    B, T, _ = x.shape
    layers = torch_style[:2]
    lin_w, lin_b = torch_style[2]
    out = x
    hs, cs = [], []
    for li, (w_ih, w_hh, b_ih, b_hh) in enumerate(layers):
        H = w_hh.shape[1]
        h, c = h0[li], c0[li]
        seq = []
        for t in range(T):
            g = out[:, t, :] @ w_ih.T + b_ih + h @ w_hh.T + b_hh
            i = jax.nn.sigmoid(g[:, :H])
            f = jax.nn.sigmoid(g[:, H:2 * H])
            gg = jnp.tanh(g[:, 2 * H:3 * H])
            o = jax.nn.sigmoid(g[:, 3 * H:4 * H])
            c = f * c + i * gg
            h = o * jnp.tanh(c)
            seq.append(h)
        out = jnp.stack(seq, axis=1)
        hs.append(h)
        cs.append(c)
    prob = jax.nn.sigmoid(out @ lin_w.T + lin_b)
    return prob, (jnp.stack(hs), jnp.stack(cs))


if __name__ == "__main__":
    B, T, INPUT_SIZE, HIDDEN_SIZE, NUM_LAYERS = 2, 8, 8, 32, 2

    key = jax.random.PRNGKey(0)
    k_x, k_h, k_c, k_p = jax.random.split(key, 4)
    x = jax.random.normal(k_x, (B, T, INPUT_SIZE), jnp.float32)
    h0 = jax.random.normal(k_h, (NUM_LAYERS, B, HIDDEN_SIZE), jnp.float32)
    c0 = jax.random.normal(k_c, (NUM_LAYERS, B, HIDDEN_SIZE), jnp.float32)

    torch_style, kernel_params = init_params(k_p, INPUT_SIZE, HIDDEN_SIZE)

    prob, (hn, cn) = position_closer_forward(x, (h0, c0), kernel_params)
    jax.block_until_ready((prob, hn, cn))

    prob_ref, (hn_ref, cn_ref) = reference_forward(x, (h0, c0), torch_style)
    assert prob.shape == (B, T, 1) and hn.shape == (NUM_LAYERS, B, HIDDEN_SIZE)
    # Loose tolerances because MXU operands are bf16 (elementwise/recurrent state stay f32).
    assert jnp.allclose(prob, prob_ref, atol=3e-2), "prob mismatch"
    assert jnp.allclose(hn, hn_ref, atol=3e-2), "h_n mismatch"
    assert jnp.allclose(cn, cn_ref, atol=5e-2), "c_n mismatch"

    print("KERNEL_OK")
</pallas_src>

<mosaic_0001>
module attributes {stable_mosaic.version = 11 : i64} {
  func.func @position_closer_kernel(%arg0: memref<8x2x8xbf16, #tpu.memory_space<vmem>>, %arg1: memref<2x2x32xf32, #tpu.memory_space<vmem>>, %arg2: memref<2x2x32xf32, #tpu.memory_space<vmem>>, %arg3: memref<8x128xbf16, #tpu.memory_space<vmem>>, %arg4: memref<32x128xbf16, #tpu.memory_space<vmem>>, %arg5: memref<1x128xf32, #tpu.memory_space<vmem>>, %arg6: memref<32x128xbf16, #tpu.memory_space<vmem>>, %arg7: memref<32x128xbf16, #tpu.memory_space<vmem>>, %arg8: memref<1x128xf32, #tpu.memory_space<vmem>>, %arg9: memref<1x1x32xf32, #tpu.memory_space<vmem>>, %arg10: memref<1x1x1xf32, #tpu.memory_space<vmem>>, %arg11: memref<8x2x1xf32, #tpu.memory_space<vmem>>, %arg12: memref<2x2x32xf32, #tpu.memory_space<vmem>>, %arg13: memref<2x2x32xf32, #tpu.memory_space<vmem>>, %arg14: memref<8x2x32xf32, #tpu.memory_space<vmem>>) attributes {dimension_semantics = [], scalar_prefetch = 0 : i64, scratch_operands = 1 : i64, tpu.core_type = #tpu.core_type<tc>} {
    %c0 = arith.constant 0 : index
    %c0_0 = arith.constant 0 : index
    %0 = vector.load %arg3[%c0, %c0_0] : memref<8x128xbf16, #tpu.memory_space<vmem>>, vector<8x128xbf16>
    %c0_1 = arith.constant 0 : index
    %c0_2 = arith.constant 0 : index
    %1 = vector.load %arg4[%c0_1, %c0_2] : memref<32x128xbf16, #tpu.memory_space<vmem>>, vector<32x128xbf16>
    %c0_3 = arith.constant 0 : index
    %c0_4 = arith.constant 0 : index
    %2 = vector.load %arg5[%c0_3, %c0_4] : memref<1x128xf32, #tpu.memory_space<vmem>>, vector<1x128xf32>
    %c0_5 = arith.constant 0 : index
    %c0_6 = arith.constant 0 : index
    %3 = vector.load %arg6[%c0_5, %c0_6] : memref<32x128xbf16, #tpu.memory_space<vmem>>, vector<32x128xbf16>
    %c0_7 = arith.constant 0 : index
    %c0_8 = arith.constant 0 : index
    %4 = vector.load %arg7[%c0_7, %c0_8] : memref<32x128xbf16, #tpu.memory_space<vmem>>, vector<32x128xbf16>
    %c0_9 = arith.constant 0 : index
    %c0_10 = arith.constant 0 : index
    %5 = vector.load %arg8[%c0_9, %c0_10] : memref<1x128xf32, #tpu.memory_space<vmem>>, vector<1x128xf32>
    %c0_11 = arith.constant 0 : index
    %c0_12 = arith.constant 0 : index
    %c0_13 = arith.constant 0 : index
    %6 = vector.load %arg0[%c0_11, %c0_12, %c0_13] : memref<8x2x8xbf16, #tpu.memory_space<vmem>>, vector<1x2x8xbf16>
    %7 = vector.shape_cast %6 : vector<1x2x8xbf16> to vector<2x8xbf16>
    %cst = arith.constant dense<0.000000e+00> : vector<2x128xf32>
    %8 = tpu.matmul %7, %0, %cst {dimension_numbers = #tpu.dot_dimension_numbers<[1], [0], [0], [1], [0, 0, 1, 1], [], []>} : vector<2x8xbf16>, vector<8x128xbf16>, vector<2x128xf32> -> vector<2x128xf32>
    %9 = vector.broadcast %2 : vector<1x128xf32> to vector<2x128xf32>
    %10 = arith.addf %8, %9 : vector<2x128xf32>
    %c1 = arith.constant 1 : index
    %c0_14 = arith.constant 0 : index
    %c0_15 = arith.constant 0 : index
    %11 = vector.load %arg0[%c1, %c0_14, %c0_15] : memref<8x2x8xbf16, #tpu.memory_space<vmem>>, vector<1x2x8xbf16>
    %12 = vector.shape_cast %11 : vector<1x2x8xbf16> to vector<2x8xbf16>
    %cst_16 = arith.constant dense<0.000000e+00> : vector<2x128xf32>
    %13 = tpu.matmul %12, %0, %cst_16 {dimension_numbers = #tpu.dot_dimension_numbers<[1], [0], [0], [1], [0, 0, 1, 1], [], []>} : vector<2x8xbf16>, vector<8x128xbf16>, vector<2x128xf32> -> vector<2x128xf32>
    %14 = vector.broadcast %2 : vector<1x128xf32> to vector<2x128xf32>
    %15 = arith.addf %13, %14 : vector<2x128xf32>
    %c2 = arith.constant 2 : index
    %c0_17 = arith.constant 0 : index
    %c0_18 = arith.constant 0 : index
    %16 = vector.load %arg0[%c2, %c0_17, %c0_18] : memref<8x2x8xbf16, #tpu.memory_space<vmem>>, vector<1x2x8xbf16>
    %17 = vector.shape_cast %16 : vector<1x2x8xbf16> to vector<2x8xbf16>
    %cst_19 = arith.constant dense<0.000000e+00> : vector<2x128xf32>
    %18 = tpu.matmul %17, %0, %cst_19 {dimension_numbers = #tpu.dot_dimension_numbers<[1], [0], [0], [1], [0, 0, 1, 1], [], []>} : vector<2x8xbf16>, vector<8x128xbf16>, vector<2x128xf32> -> vector<2x128xf32>
    %19 = vector.broadcast %2 : vector<1x128xf32> to vector<2x128xf32>
    %20 = arith.addf %18, %19 : vector<2x128xf32>
    %c3 = arith.constant 3 : index
    %c0_20 = arith.constant 0 : index
    %c0_21 = arith.constant 0 : index
    %21 = vector.load %arg0[%c3, %c0_20, %c0_21] : memref<8x2x8xbf16, #tpu.memory_space<vmem>>, vector<1x2x8xbf16>
    %22 = vector.shape_cast %21 : vector<1x2x8xbf16> to vector<2x8xbf16>
    %cst_22 = arith.constant dense<0.000000e+00> : vector<2x128xf32>
    %23 = tpu.matmul %22, %0, %cst_22 {dimension_numbers = #tpu.dot_dimension_numbers<[1], [0], [0], [1], [0, 0, 1, 1], [], []>} : vector<2x8xbf16>, vector<8x128xbf16>, vector<2x128xf32> -> vector<2x128xf32>
    %24 = vector.broadcast %2 : vector<1x128xf32> to vector<2x128xf32>
    %25 = arith.addf %23, %24 : vector<2x128xf32>
    %c4 = arith.constant 4 : index
    %c0_23 = arith.constant 0 : index
    %c0_24 = arith.constant 0 : index
    %26 = vector.load %arg0[%c4, %c0_23, %c0_24] : memref<8x2x8xbf16, #tpu.memory_space<vmem>>, vector<1x2x8xbf16>
    %27 = vector.shape_cast %26 : vector<1x2x8xbf16> to vector<2x8xbf16>
    %cst_25 = arith.constant dense<0.000000e+00> : vector<2x128xf32>
    %28 = tpu.matmul %27, %0, %cst_25 {dimension_numbers = #tpu.dot_dimension_numbers<[1], [0], [0], [1], [0, 0, 1, 1], [], []>} : vector<2x8xbf16>, vector<8x128xbf16>, vector<2x128xf32> -> vector<2x128xf32>
    %29 = vector.broadcast %2 : vector<1x128xf32> to vector<2x128xf32>
    %30 = arith.addf %28, %29 : vector<2x128xf32>
    %c5 = arith.constant 5 : index
    %c0_26 = arith.constant 0 : index
    %c0_27 = arith.constant 0 : index
    %31 = vector.load %arg0[%c5, %c0_26, %c0_27] : memref<8x2x8xbf16, #tpu.memory_space<vmem>>, vector<1x2x8xbf16>
    %32 = vector.shape_cast %31 : vector<1x2x8xbf16> to vector<2x8xbf16>
    %cst_28 = arith.constant dense<0.000000e+00> : vector<2x128xf32>
    %33 = tpu.matmul %32, %0, %cst_28 {dimension_numbers = #tpu.dot_dimension_numbers<[1], [0], [0], [1], [0, 0, 1, 1], [], []>} : vector<2x8xbf16>, vector<8x128xbf16>, vector<2x128xf32> -> vector<2x128xf32>
    %34 = vector.broadcast %2 : vector<1x128xf32> to vector<2x128xf32>
    %35 = arith.addf %33, %34 : vector<2x128xf32>
    %c6 = arith.constant 6 : index
    %c0_29 = arith.constant 0 : index
    %c0_30 = arith.constant 0 : index
    %36 = vector.load %arg0[%c6, %c0_29, %c0_30] : memref<8x2x8xbf16, #tpu.memory_space<vmem>>, vector<1x2x8xbf16>
    %37 = vector.shape_cast %36 : vector<1x2x8xbf16> to vector<2x8xbf16>
    %cst_31 = arith.constant dense<0.000000e+00> : vector<2x128xf32>
    %38 = tpu.matmul %37, %0, %cst_31 {dimension_numbers = #tpu.dot_dimension_numbers<[1], [0], [0], [1], [0, 0, 1, 1], [], []>} : vector<2x8xbf16>, vector<8x128xbf16>, vector<2x128xf32> -> vector<2x128xf32>
    %39 = vector.broadcast %2 : vector<1x128xf32> to vector<2x128xf32>
    %40 = arith.addf %38, %39 : vector<2x128xf32>
    %c7 = arith.constant 7 : index
    %c0_32 = arith.constant 0 : index
    %c0_33 = arith.constant 0 : index
    %41 = vector.load %arg0[%c7, %c0_32, %c0_33] : memref<8x2x8xbf16, #tpu.memory_space<vmem>>, vector<1x2x8xbf16>
    %42 = vector.shape_cast %41 : vector<1x2x8xbf16> to vector<2x8xbf16>
    %cst_34 = arith.constant dense<0.000000e+00> : vector<2x128xf32>
    %43 = tpu.matmul %42, %0, %cst_34 {dimension_numbers = #tpu.dot_dimension_numbers<[1], [0], [0], [1], [0, 0, 1, 1], [], []>} : vector<2x8xbf16>, vector<8x128xbf16>, vector<2x128xf32> -> vector<2x128xf32>
    %44 = vector.broadcast %2 : vector<1x128xf32> to vector<2x128xf32>
    %45 = arith.addf %43, %44 : vector<2x128xf32>
    %c0_35 = arith.constant 0 : index
    %c0_36 = arith.constant 0 : index
    %c0_37 = arith.constant 0 : index
    %46 = vector.load %arg1[%c0_35, %c0_36, %c0_37] : memref<2x2x32xf32, #tpu.memory_space<vmem>>, vector<1x2x32xf32>
    %47 = vector.shape_cast %46 : vector<1x2x32xf32> to vector<2x32xf32>
    %c0_38 = arith.constant 0 : index
    %c0_39 = arith.constant 0 : index
    %c0_40 = arith.constant 0 : index
    %48 = vector.load %arg2[%c0_38, %c0_39, %c0_40] : memref<2x2x32xf32, #tpu.memory_space<vmem>>, vector<1x2x32xf32>
    %49 = vector.shape_cast %48 : vector<1x2x32xf32> to vector<2x32xf32>
    %c1_41 = arith.constant 1 : index
    %c0_42 = arith.constant 0 : index
    %c0_43 = arith.constant 0 : index
    %50 = vector.load %arg1[%c1_41, %c0_42, %c0_43] : memref<2x2x32xf32, #tpu.memory_space<vmem>>, vector<1x2x32xf32>
    %51 = vector.shape_cast %50 : vector<1x2x32xf32> to vector<2x32xf32>
    %c1_44 = arith.constant 1 : index
    %c0_45 = arith.constant 0 : index
    %c0_46 = arith.constant 0 : index
    %52 = vector.load %arg2[%c1_44, %c0_45, %c0_46] : memref<2x2x32xf32, #tpu.memory_space<vmem>>, vector<1x2x32xf32>
    %53 = vector.shape_cast %52 : vector<1x2x32xf32> to vector<2x32xf32>
    %54 = arith.truncf %47 : vector<2x32xf32> to vector<2x32xbf16>
    %cst_47 = arith.constant dense<0.000000e+00> : vector<2x128xf32>
    %55 = tpu.matmul %54, %1, %cst_47 {dimension_numbers = #tpu.dot_dimension_numbers<[1], [0], [0], [1], [0, 0, 1, 1], [], []>} : vector<2x32xbf16>, vector<32x128xbf16>, vector<2x128xf32> -> vector<2x128xf32>
    %56 = arith.addf %10, %55 : vector<2x128xf32>
    %57 = arith.negf %56 : vector<2x128xf32>
    %58 = math.exp %57 : vector<2x128xf32>
    %cst_48 = arith.constant 1.000000e+00 : f32
    %59 = vector.broadcast %cst_48 : f32 to vector<2x128xf32>
    %60 = arith.addf %59, %58 : vector<2x128xf32>
    %61 = arith.divf %59, %60 : vector<2x128xf32>
    %62 = math.tanh %56 : vector<2x128xf32>
    %63 = vector.extract_strided_slice %61 {offsets = [0, 0], sizes = [2, 32], strides = [1, 1]} : vector<2x128xf32> to vector<2x32xf32>
    %64 = vector.extract_strided_slice %61 {offsets = [0, 32], sizes = [2, 32], strides = [1, 1]} : vector<2x128xf32> to vector<2x32xf32>
    %65 = vector.extract_strided_slice %62 {offsets = [0, 64], sizes = [2, 32], strides = [1, 1]} : vector<2x128xf32> to vector<2x32xf32>
    %66 = vector.extract_strided_slice %61 {offsets = [0, 96], sizes = [2, 32], strides = [1, 1]} : vector<2x128xf32> to vector<2x32xf32>
    %67 = arith.mulf %64, %49 : vector<2x32xf32>
    %68 = arith.mulf %63, %65 : vector<2x32xf32>
    %69 = arith.addf %67, %68 : vector<2x32xf32>
    %70 = math.tanh %69 : vector<2x32xf32>
    %71 = arith.mulf %66, %70 : vector<2x32xf32>
    %72 = arith.truncf %71 : vector<2x32xf32> to vector<2x32xbf16>
    %cst_49 = arith.constant dense<0.000000e+00> : vector<2x128xf32>
    %73 = tpu.matmul %72, %3, %cst_49 {dimension_numbers = #tpu.dot_dimension_numbers<[1], [0], [0], [1], [0, 0, 1, 1], [], []>} : vector<2x32xbf16>, vector<32x128xbf16>, vector<2x128xf32> -> vector<2x128xf32>
    %74 = arith.truncf %51 : vector<2x32xf32> to vector<2x32xbf16>
    %cst_50 = arith.constant dense<0.000000e+00> : vector<2x128xf32>
    %75 = tpu.matmul %74, %4, %cst_50 {dimension_numbers = #tpu.dot_dimension_numbers<[1], [0], [0], [1], [0, 0, 1, 1], [], []>} : vector<2x32xbf16>, vector<32x128xbf16>, vector<2x128xf32> -> vector<2x128xf32>
    %76 = arith.addf %73, %75 : vector<2x128xf32>
    %77 = vector.broadcast %5 : vector<1x128xf32> to vector<2x128xf32>
    %78 = arith.addf %76, %77 : vector<2x128xf32>
    %79 = arith.negf %78 : vector<2x128xf32>
    %80 = math.exp %79 : vector<2x128xf32>
    %cst_51 = arith.constant 1.000000e+00 : f32
    %81 = vector.broadcast %cst_51 : f32 to vector<2x128xf32>
    %82 = arith.addf %81, %80 : vector<2x128xf32>
    %83 = arith.divf %81, %82 : vector<2x128xf32>
    %84 = math.tanh %78 : vector<2x128xf32>
    %85 = vector.extract_strided_slice %83 {offsets = [0, 0], sizes = [2, 32], strides = [1, 1]} : vector<2x128xf32> to vector<2x32xf32>
    %86 = vector.extract_strided_slice %83 {offsets = [0, 32], sizes = [2, 32], strides = [1, 1]} : vector<2x128xf32> to vector<2x32xf32>
    %87 = vector.extract_strided_slice %84 {offsets = [0, 64], sizes = [2, 32], strides = [1, 1]} : vector<2x128xf32> to vector<2x32xf32>
    %88 = vector.extract_strided_slice %83 {offsets = [0, 96], sizes = [2, 32], strides = [1, 1]} : vector<2x128xf32> to vector<2x32xf32>
    %89 = arith.mulf %86, %53 : vector<2x32xf32>
    %90 = arith.mulf %85, %87 : vector<2x32xf32>
    %91 = arith.addf %89, %90 : vector<2x32xf32>
    %92 = math.tanh %91 : vector<2x32xf32>
    %93 = arith.mulf %88, %92 : vector<2x32xf32>
    %c0_52 = arith.constant 0 : index
    %c0_53 = arith.constant 0 : index
    %c0_54 = arith.constant 0 : index
    %94 = vector.load %arg14[%c0_52, %c0_53, %c0_54] : memref<8x2x32xf32, #tpu.memory_space<vmem>>, vector<1x2x32xf32>
    %95 = vector.shape_cast %94 : vector<1x2x32xf32> to vector<2x32xf32>
    %96 = vector.shape_cast %93 : vector<2x32xf32> to vector<1x2x32xf32>
    tpu.vector_store %arg14[%c0_52, %c0_53, %c0_54], %96 {strides = array<i32>} : memref<8x2x32xf32, #tpu.memory_space<vmem>>, vector<1x2x32xf32>,
    %97 = arith.truncf %71 : vector<2x32xf32> to vector<2x32xbf16>
    %cst_55 = arith.constant dense<0.000000e+00> : vector<2x128xf32>
    %98 = tpu.matmul %97, %1, %cst_55 {dimension_numbers = #tpu.dot_dimension_numbers<[1], [0], [0], [1], [0, 0, 1, 1], [], []>} : vector<2x32xbf16>, vector<32x128xbf16>, vector<2x128xf32> -> vector<2x128xf32>
    %99 = arith.addf %15, %98 : vector<2x128xf32>
    %100 = arith.negf %99 : vector<2x128xf32>
    %101 = math.exp %100 : vector<2x128xf32>
    %cst_56 = arith.constant 1.000000e+00 : f32
    %102 = vector.broadcast %cst_56 : f32 to vector<2x128xf32>
    %103 = arith.addf %102, %101 : vector<2x128xf32>
    %104 = arith.divf %102, %103 : vector<2x128xf32>
    %105 = math.tanh %99 : vector<2x128xf32>
    %106 = vector.extract_strided_slice %104 {offsets = [0, 0], sizes = [2, 32], strides = [1, 1]} : vector<2x128xf32> to vector<2x32xf32>
    %107 = vector.extract_strided_slice %104 {offsets = [0, 32], sizes = [2, 32], strides = [1, 1]} : vector<2x128xf32> to vector<2x32xf32>
    %108 = vector.extract_strided_slice %105 {offsets = [0, 64], sizes = [2, 32], strides = [1, 1]} : vector<2x128xf32> to vector<2x32xf32>
    %109 = vector.extract_strided_slice %104 {offsets = [0, 96], sizes = [2, 32], strides = [1, 1]} : vector<2x128xf32> to vector<2x32xf32>
    %110 = arith.mulf %107, %69 : vector<2x32xf32>
    %111 = arith.mulf %106, %108 : vector<2x32xf32>
    %112 = arith.addf %110, %111 : vector<2x32xf32>
    %113 = math.tanh %112 : vector<2x32xf32>
    %114 = arith.mulf %109, %113 : vector<2x32xf32>
    %115 = arith.truncf %114 : vector<2x32xf32> to vector<2x32xbf16>
    %cst_57 = arith.constant dense<0.000000e+00> : vector<2x128xf32>
    %116 = tpu.matmul %115, %3, %cst_57 {dimension_numbers = #tpu.dot_dimension_numbers<[1], [0], [0], [1], [0, 0, 1, 1], [], []>} : vector<2x32xbf16>, vector<32x128xbf16>, vector<2x128xf32> -> vector<2x128xf32>
    %117 = arith.truncf %93 : vector<2x32xf32> to vector<2x32xbf16>
    %cst_58 = arith.constant dense<0.000000e+00> : vector<2x128xf32>
    %118 = tpu.matmul %117, %4, %cst_58 {dimension_numbers = #tpu.dot_dimension_numbers<[1], [0], [0], [1], [0, 0, 1, 1], [], []>} : vector<2x32xbf16>, vector<32x128xbf16>, vector<2x128xf32> -> vector<2x128xf32>
    %119 = arith.addf %116, %118 : vector<2x128xf32>
    %120 = vector.broadcast %5 : vector<1x128xf32> to vector<2x128xf32>
    %121 = arith.addf %119, %120 : vector<2x128xf32>
    %122 = arith.negf %121 : vector<2x128xf32>
    %123 = math.exp %122 : vector<2x128xf32>
    %cst_59 = arith.constant 1.000000e+00 : f32
    %124 = vector.broadcast %cst_59 : f32 to vector<2x128xf32>
    %125 = arith.addf %124, %123 : vector<2x128xf32>
    %126 = arith.divf %124, %125 : vector<2x128xf32>
    %127 = math.tanh %121 : vector<2x128xf32>
    %128 = vector.extract_strided_slice %126 {offsets = [0, 0], sizes = [2, 32], strides = [1, 1]} : vector<2x128xf32> to vector<2x32xf32>
    %129 = vector.extract_strided_slice %126 {offsets = [0, 32], sizes = [2, 32], strides = [1, 1]} : vector<2x128xf32> to vector<2x32xf32>
    %130 = vector.extract_strided_slice %127 {offsets = [0, 64], sizes = [2, 32], strides = [1, 1]} : vector<2x128xf32> to vector<2x32xf32>
    %131 = vector.extract_strided_slice %126 {offsets = [0, 96], sizes = [2, 32], strides = [1, 1]} : vector<2x128xf32> to vector<2x32xf32>
    %132 = arith.mulf %129, %91 : vector<2x32xf32>
    %133 = arith.mulf %128, %130 : vector<2x32xf32>
    %134 = arith.addf %132, %133 : vector<2x32xf32>
    %135 = math.tanh %134 : vector<2x32xf32>
    %136 = arith.mulf %131, %135 : vector<2x32xf32>
    %c1_60 = arith.constant 1 : index
    %c0_61 = arith.constant 0 : index
    %c0_62 = arith.constant 0 : index
    %137 = vector.load %arg14[%c1_60, %c0_61, %c0_62] : memref<8x2x32xf32, #tpu.memory_space<vmem>>, vector<1x2x32xf32>
    %138 = vector.shape_cast %137 : vector<1x2x32xf32> to vector<2x32xf32>
    %139 = vector.shape_cast %136 : vector<2x32xf32> to vector<1x2x32xf32>
    tpu.vector_store %arg14[%c1_60, %c0_61, %c0_62], %139 {strides = array<i32>} : memref<8x2x32xf32, #tpu.memory_space<vmem>>, vector<1x2x32xf32>,
    %140 = arith.truncf %114 : vector<2x32xf32> to vector<2x32xbf16>
    %cst_63 = arith.constant dense<0.000000e+00> : vector<2x128xf32>
    %141 = tpu.matmul %140, %1, %cst_63 {dimension_numbers = #tpu.dot_dimension_numbers<[1], [0], [0], [1], [0, 0, 1, 1], [], []>} : vector<2x32xbf16>, vector<32x128xbf16>, vector<2x128xf32> -> vector<2x128xf32>
    %142 = arith.addf %20, %141 : vector<2x128xf32>
    %143 = arith.negf %142 : vector<2x128xf32>
    %144 = math.exp %143 : vector<2x128xf32>
    %cst_64 = arith.constant 1.000000e+00 : f32
    %145 = vector.broadcast %cst_64 : f32 to vector<2x128xf32>
    %146 = arith.addf %145, %144 : vector<2x128xf32>
    %147 = arith.divf %145, %146 : vector<2x128xf32>
    %148 = math.tanh %142 : vector<2x128xf32>
    %149 = vector.extract_strided_slice %147 {offsets = [0, 0], sizes = [2, 32], strides = [1, 1]} : vector<2x128xf32> to vector<2x32xf32>
    %150 = vector.extract_strided_slice %147 {offsets = [0, 32], sizes = [2, 32], strides = [1, 1]} : vector<2x128xf32> to vector<2x32xf32>
    %151 = vector.extract_strided_slice %148 {offsets = [0, 64], sizes = [2, 32], strides = [1, 1]} : vector<2x128xf32> to vector<2x32xf32>
    %152 = vector.extract_strided_slice %147 {offsets = [0, 96], sizes = [2, 32], strides = [1, 1]} : vector<2x128xf32> to vector<2x32xf32>
    %153 = arith.mulf %150, %112 : vector<2x32xf32>
    %154 = arith.mulf %149, %151 : vector<2x32xf32>
    %155 = arith.addf %153, %154 : vector<2x32xf32>
    %156 = math.tanh %155 : vector<2x32xf32>
    %157 = arith.mulf %152, %156 : vector<2x32xf32>
    %158 = arith.truncf %157 : vector<2x32xf32> to vector<2x32xbf16>
    %cst_65 = arith.constant dense<0.000000e+00> : vector<2x128xf32>
    %159 = tpu.matmul %158, %3, %cst_65 {dimension_numbers = #tpu.dot_dimension_numbers<[1], [0], [0], [1], [0, 0, 1, 1], [], []>} : vector<2x32xbf16>, vector<32x128xbf16>, vector<2x128xf32> -> vector<2x128xf32>
    %160 = arith.truncf %136 : vector<2x32xf32> to vector<2x32xbf16>
    %cst_66 = arith.constant dense<0.000000e+00> : vector<2x128xf32>
    %161 = tpu.matmul %160, %4, %cst_66 {dimension_numbers = #tpu.dot_dimension_numbers<[1], [0], [0], [1], [0, 0, 1, 1], [], []>} : vector<2x32xbf16>, vector<32x128xbf16>, vector<2x128xf32> -> vector<2x128xf32>
    %162 = arith.addf %159, %161 : vector<2x128xf32>
    %163 = vector.broadcast %5 : vector<1x128xf32> to vector<2x128xf32>
    %164 = arith.addf %162, %163 : vector<2x128xf32>
    %165 = arith.negf %164 : vector<2x128xf32>
    %166 = math.exp %165 : vector<2x128xf32>
    %cst_67 = arith.constant 1.000000e+00 : f32
    %167 = vector.broadcast %cst_67 : f32 to vector<2x128xf32>
    %168 = arith.addf %167, %166 : vector<2x128xf32>
    %169 = arith.divf %167, %168 : vector<2x128xf32>
    %170 = math.tanh %164 : vector<2x128xf32>
    %171 = vector.extract_strided_slice %169 {offsets = [0, 0], sizes = [2, 32], strides = [1, 1]} : vector<2x128xf32> to vector<2x32xf32>
    %172 = vector.extract_strided_slice %169 {offsets = [0, 32], sizes = [2, 32], strides = [1, 1]} : vector<2x128xf32> to vector<2x32xf32>
    %173 = vector.extract_strided_slice %170 {offsets = [0, 64], sizes = [2, 32], strides = [1, 1]} : vector<2x128xf32> to vector<2x32xf32>
    %174 = vector.extract_strided_slice %169 {offsets = [0, 96], sizes = [2, 32], strides = [1, 1]} : vector<2x128xf32> to vector<2x32xf32>
    %175 = arith.mulf %172, %134 : vector<2x32xf32>
    %176 = arith.mulf %171, %173 : vector<2x32xf32>
    %177 = arith.addf %175, %176 : vector<2x32xf32>
    %178 = math.tanh %177 : vector<2x32xf32>
    %179 = arith.mulf %174, %178 : vector<2x32xf32>
    %c2_68 = arith.constant 2 : index
    %c0_69 = arith.constant 0 : index
    %c0_70 = arith.constant 0 : index
    %180 = vector.load %arg14[%c2_68, %c0_69, %c0_70] : memref<8x2x32xf32, #tpu.memory_space<vmem>>, vector<1x2x32xf32>
    %181 = vector.shape_cast %180 : vector<1x2x32xf32> to vector<2x32xf32>
    %182 = vector.shape_cast %179 : vector<2x32xf32> to vector<1x2x32xf32>
    tpu.vector_store %arg14[%c2_68, %c0_69, %c0_70], %182 {strides = array<i32>} : memref<8x2x32xf32, #tpu.memory_space<vmem>>, vector<1x2x32xf32>,
    %183 = arith.truncf %157 : vector<2x32xf32> to vector<2x32xbf16>
    %cst_71 = arith.constant dense<0.000000e+00> : vector<2x128xf32>
    %184 = tpu.matmul %183, %1, %cst_71 {dimension_numbers = #tpu.dot_dimension_numbers<[1], [0], [0], [1], [0, 0, 1, 1], [], []>} : vector<2x32xbf16>, vector<32x128xbf16>, vector<2x128xf32> -> vector<2x128xf32>
    %185 = arith.addf %25, %184 : vector<2x128xf32>
    %186 = arith.negf %185 : vector<2x128xf32>
    %187 = math.exp %186 : vector<2x128xf32>
    %cst_72 = arith.constant 1.000000e+00 : f32
    %188 = vector.broadcast %cst_72 : f32 to vector<2x128xf32>
    %189 = arith.addf %188, %187 : vector<2x128xf32>
    %190 = arith.divf %188, %189 : vector<2x128xf32>
    %191 = math.tanh %185 : vector<2x128xf32>
    %192 = vector.extract_strided_slice %190 {offsets = [0, 0], sizes = [2, 32], strides = [1, 1]} : vector<2x128xf32> to vector<2x32xf32>
    %193 = vector.extract_strided_slice %190 {offsets = [0, 32], sizes = [2, 32], strides = [1, 1]} : vector<2x128xf32> to vector<2x32xf32>
    %194 = vector.extract_strided_slice %191 {offsets = [0, 64], sizes = [2, 32], strides = [1, 1]} : vector<2x128xf32> to vector<2x32xf32>
    %195 = vector.extract_strided_slice %190 {offsets = [0, 96], sizes = [2, 32], strides = [1, 1]} : vector<2x128xf32> to vector<2x32xf32>
    %196 = arith.mulf %193, %155 : vector<2x32xf32>
    %197 = arith.mulf %192, %194 : vector<2x32xf32>
    %198 = arith.addf %196, %197 : vector<2x32xf32>
    %199 = math.tanh %198 : vector<2x32xf32>
    %200 = arith.mulf %195, %199 : vector<2x32xf32>
    %201 = arith.truncf %200 : vector<2x32xf32> to vector<2x32xbf16>
    %cst_73 = arith.constant dense<0.000000e+00> : vector<2x128xf32>
    %202 = tpu.matmul %201, %3, %cst_73 {dimension_numbers = #tpu.dot_dimension_numbers<[1], [0], [0], [1], [0, 0, 1, 1], [], []>} : vector<2x32xbf16>, vector<32x128xbf16>, vector<2x128xf32> -> vector<2x128xf32>
    %203 = arith.truncf %179 : vector<2x32xf32> to vector<2x32xbf16>
    %cst_74 = arith.constant dense<0.000000e+00> : vector<2x128xf32>
    %204 = tpu.matmul %203, %4, %cst_74 {dimension_numbers = #tpu.dot_dimension_numbers<[1], [0], [0], [1], [0, 0, 1, 1], [], []>} : vector<2x32xbf16>, vector<32x128xbf16>, vector<2x128xf32> -> vector<2x128xf32>
    %205 = arith.addf %202, %204 : vector<2x128xf32>
    %206 = vector.broadcast %5 : vector<1x128xf32> to vector<2x128xf32>
    %207 = arith.addf %205, %206 : vector<2x128xf32>
    %208 = arith.negf %207 : vector<2x128xf32>
    %209 = math.exp %208 : vector<2x128xf32>
    %cst_75 = arith.constant 1.000000e+00 : f32
    %210 = vector.broadcast %cst_75 : f32 to vector<2x128xf32>
    %211 = arith.addf %210, %209 : vector<2x128xf32>
    %212 = arith.divf %210, %211 : vector<2x128xf32>
    %213 = math.tanh %207 : vector<2x128xf32>
    %214 = vector.extract_strided_slice %212 {offsets = [0, 0], sizes = [2, 32], strides = [1, 1]} : vector<2x128xf32> to vector<2x32xf32>
    %215 = vector.extract_strided_slice %212 {offsets = [0, 32], sizes = [2, 32], strides = [1, 1]} : vector<2x128xf32> to vector<2x32xf32>
    %216 = vector.extract_strided_slice %213 {offsets = [0, 64], sizes = [2, 32], strides = [1, 1]} : vector<2x128xf32> to vector<2x32xf32>
    %217 = vector.extract_strided_slice %212 {offsets = [0, 96], sizes = [2, 32], strides = [1, 1]} : vector<2x128xf32> to vector<2x32xf32>
    %218 = arith.mulf %215, %177 : vector<2x32xf32>
    %219 = arith.mulf %214, %216 : vector<2x32xf32>
    %220 = arith.addf %218, %219 : vector<2x32xf32>
    %221 = math.tanh %220 : vector<2x32xf32>
    %222 = arith.mulf %217, %221 : vector<2x32xf32>
    %c3_76 = arith.constant 3 : index
    %c0_77 = arith.constant 0 : index
    %c0_78 = arith.constant 0 : index
    %223 = vector.load %arg14[%c3_76, %c0_77, %c0_78] : memref<8x2x32xf32, #tpu.memory_space<vmem>>, vector<1x2x32xf32>
    %224 = vector.shape_cast %223 : vector<1x2x32xf32> to vector<2x32xf32>
    %225 = vector.shape_cast %222 : vector<2x32xf32> to vector<1x2x32xf32>
    tpu.vector_store %arg14[%c3_76, %c0_77, %c0_78], %225 {strides = array<i32>} : memref<8x2x32xf32, #tpu.memory_space<vmem>>, vector<1x2x32xf32>,
    %226 = arith.truncf %200 : vector<2x32xf32> to vector<2x32xbf16>
    %cst_79 = arith.constant dense<0.000000e+00> : vector<2x128xf32>
    %227 = tpu.matmul %226, %1, %cst_79 {dimension_numbers = #tpu.dot_dimension_numbers<[1], [0], [0], [1], [0, 0, 1, 1], [], []>} : vector<2x32xbf16>, vector<32x128xbf16>, vector<2x128xf32> -> vector<2x128xf32>
    %228 = arith.addf %30, %227 : vector<2x128xf32>
    %229 = arith.negf %228 : vector<2x128xf32>
    %230 = math.exp %229 : vector<2x128xf32>
    %cst_80 = arith.constant 1.000000e+00 : f32
    %231 = vector.broadcast %cst_80 : f32 to vector<2x128xf32>
    %232 = arith.addf %231, %230 : vector<2x128xf32>
    %233 = arith.divf %231, %232 : vector<2x128xf32>
    %234 = math.tanh %228 : vector<2x128xf32>
    %235 = vector.extract_strided_slice %233 {offsets = [0, 0], sizes = [2, 32], strides = [1, 1]} : vector<2x128xf32> to vector<2x32xf32>
    %236 = vector.extract_strided_slice %233 {offsets = [0, 32], sizes = [2, 32], strides = [1, 1]} : vector<2x128xf32> to vector<2x32xf32>
    %237 = vector.extract_strided_slice %234 {offsets = [0, 64], sizes = [2, 32], strides = [1, 1]} : vector<2x128xf32> to vector<2x32xf32>
    %238 = vector.extract_strided_slice %233 {offsets = [0, 96], sizes = [2, 32], strides = [1, 1]} : vector<2x128xf32> to vector<2x32xf32>
    %239 = arith.mulf %236, %198 : vector<2x32xf32>
    %240 = arith.mulf %235, %237 : vector<2x32xf32>
    %241 = arith.addf %239, %240 : vector<2x32xf32>
    %242 = math.tanh %241 : vector<2x32xf32>
    %243 = arith.mulf %238, %242 : vector<2x32xf32>
    %244 = arith.truncf %243 : vector<2x32xf32> to vector<2x32xbf16>
    %cst_81 = arith.constant dense<0.000000e+00> : vector<2x128xf32>
    %245 = tpu.matmul %244, %3, %cst_81 {dimension_numbers = #tpu.dot_dimension_numbers<[1], [0], [0], [1], [0, 0, 1, 1], [], []>} : vector<2x32xbf16>, vector<32x128xbf16>, vector<2x128xf32> -> vector<2x128xf32>
    %246 = arith.truncf %222 : vector<2x32xf32> to vector<2x32xbf16>
    %cst_82 = arith.constant dense<0.000000e+00> : vector<2x128xf32>
    %247 = tpu.matmul %246, %4, %cst_82 {dimension_numbers = #tpu.dot_dimension_numbers<[1], [0], [0], [1], [0, 0, 1, 1], [], []>} : vector<2x32xbf16>, vector<32x128xbf16>, vector<2x128xf32> -> vector<2x128xf32>
    %248 = arith.addf %245, %247 : vector<2x128xf32>
    %249 = vector.broadcast %5 : vector<1x128xf32> to vector<2x128xf32>
    %250 = arith.addf %248, %249 : vector<2x128xf32>
    %251 = arith.negf %250 : vector<2x128xf32>
    %252 = math.exp %251 : vector<2x128xf32>
    %cst_83 = arith.constant 1.000000e+00 : f32
    %253 = vector.broadcast %cst_83 : f32 to vector<2x128xf32>
    %254 = arith.addf %253, %252 : vector<2x128xf32>
    %255 = arith.divf %253, %254 : vector<2x128xf32>
    %256 = math.tanh %250 : vector<2x128xf32>
    %257 = vector.extract_strided_slice %255 {offsets = [0, 0], sizes = [2, 32], strides = [1, 1]} : vector<2x128xf32> to vector<2x32xf32>
    %258 = vector.extract_strided_slice %255 {offsets = [0, 32], sizes = [2, 32], strides = [1, 1]} : vector<2x128xf32> to vector<2x32xf32>
    %259 = vector.extract_strided_slice %256 {offsets = [0, 64], sizes = [2, 32], strides = [1, 1]} : vector<2x128xf32> to vector<2x32xf32>
    %260 = vector.extract_strided_slice %255 {offsets = [0, 96], sizes = [2, 32], strides = [1, 1]} : vector<2x128xf32> to vector<2x32xf32>
    %261 = arith.mulf %258, %220 : vector<2x32xf32>
    %262 = arith.mulf %257, %259 : vector<2x32xf32>
    %263 = arith.addf %261, %262 : vector<2x32xf32>
    %264 = math.tanh %263 : vector<2x32xf32>
    %265 = arith.mulf %260, %264 : vector<2x32xf32>
    %c4_84 = arith.constant 4 : index
    %c0_85 = arith.constant 0 : index
    %c0_86 = arith.constant 0 : index
    %266 = vector.load %arg14[%c4_84, %c0_85, %c0_86] : memref<8x2x32xf32, #tpu.memory_space<vmem>>, vector<1x2x32xf32>
    %267 = vector.shape_cast %266 : vector<1x2x32xf32> to vector<2x32xf32>
    %268 = vector.shape_cast %265 : vector<2x32xf32> to vector<1x2x32xf32>
    tpu.vector_store %arg14[%c4_84, %c0_85, %c0_86], %268 {strides = array<i32>} : memref<8x2x32xf32, #tpu.memory_space<vmem>>, vector<1x2x32xf32>,
    %269 = arith.truncf %243 : vector<2x32xf32> to vector<2x32xbf16>
    %cst_87 = arith.constant dense<0.000000e+00> : vector<2x128xf32>
    %270 = tpu.matmul %269, %1, %cst_87 {dimension_numbers = #tpu.dot_dimension_numbers<[1], [0], [0], [1], [0, 0, 1, 1], [], []>} : vector<2x32xbf16>, vector<32x128xbf16>, vector<2x128xf32> -> vector<2x128xf32>
    %271 = arith.addf %35, %270 : vector<2x128xf32>
    %272 = arith.negf %271 : vector<2x128xf32>
    %273 = math.exp %272 : vector<2x128xf32>
    %cst_88 = arith.constant 1.000000e+00 : f32
    %274 = vector.broadcast %cst_88 : f32 to vector<2x128xf32>
    %275 = arith.addf %274, %273 : vector<2x128xf32>
    %276 = arith.divf %274, %275 : vector<2x128xf32>
    %277 = math.tanh %271 : vector<2x128xf32>
    %278 = vector.extract_strided_slice %276 {offsets = [0, 0], sizes = [2, 32], strides = [1, 1]} : vector<2x128xf32> to vector<2x32xf32>
    %279 = vector.extract_strided_slice %276 {offsets = [0, 32], sizes = [2, 32], strides = [1, 1]} : vector<2x128xf32> to vector<2x32xf32>
    %280 = vector.extract_strided_slice %277 {offsets = [0, 64], sizes = [2, 32], strides = [1, 1]} : vector<2x128xf32> to vector<2x32xf32>
    %281 = vector.extract_strided_slice %276 {offsets = [0, 96], sizes = [2, 32], strides = [1, 1]} : vector<2x128xf32> to vector<2x32xf32>
    %282 = arith.mulf %279, %241 : vector<2x32xf32>
    %283 = arith.mulf %278, %280 : vector<2x32xf32>
    %284 = arith.addf %282, %283 : vector<2x32xf32>
    %285 = math.tanh %284 : vector<2x32xf32>
    %286 = arith.mulf %281, %285 : vector<2x32xf32>
    %287 = arith.truncf %286 : vector<2x32xf32> to vector<2x32xbf16>
    %cst_89 = arith.constant dense<0.000000e+00> : vector<2x128xf32>
    %288 = tpu.matmul %287, %3, %cst_89 {dimension_numbers = #tpu.dot_dimension_numbers<[1], [0], [0], [1], [0, 0, 1, 1], [], []>} : vector<2x32xbf16>, vector<32x128xbf16>, vector<2x128xf32> -> vector<2x128xf32>
    %289 = arith.truncf %265 : vector<2x32xf32> to vector<2x32xbf16>
    %cst_90 = arith.constant dense<0.000000e+00> : vector<2x128xf32>
    %290 = tpu.matmul %289, %4, %cst_90 {dimension_numbers = #tpu.dot_dimension_numbers<[1], [0], [0], [1], [0, 0, 1, 1], [], []>} : vector<2x32xbf16>, vector<32x128xbf16>, vector<2x128xf32> -> vector<2x128xf32>
    %291 = arith.addf %288, %290 : vector<2x128xf32>
    %292 = vector.broadcast %5 : vector<1x128xf32> to vector<2x128xf32>
    %293 = arith.addf %291, %292 : vector<2x128xf32>
    %294 = arith.negf %293 : vector<2x128xf32>
    %295 = math.exp %294 : vector<2x128xf32>
    %cst_91 = arith.constant 1.000000e+00 : f32
    %296 = vector.broadcast %cst_91 : f32 to vector<2x128xf32>
    %297 = arith.addf %296, %295 : vector<2x128xf32>
    %298 = arith.divf %296, %297 : vector<2x128xf32>
    %299 = math.tanh %293 : vector<2x128xf32>
    %300 = vector.extract_strided_slice %298 {offsets = [0, 0], sizes = [2, 32], strides = [1, 1]} : vector<2x128xf32> to vector<2x32xf32>
    %301 = vector.extract_strided_slice %298 {offsets = [0, 32], sizes = [2, 32], strides = [1, 1]} : vector<2x128xf32> to vector<2x32xf32>
    %302 = vector.extract_strided_slice %299 {offsets = [0, 64], sizes = [2, 32], strides = [1, 1]} : vector<2x128xf32> to vector<2x32xf32>
    %303 = vector.extract_strided_slice %298 {offsets = [0, 96], sizes = [2, 32], strides = [1, 1]} : vector<2x128xf32> to vector<2x32xf32>
    %304 = arith.mulf %301, %263 : vector<2x32xf32>
    %305 = arith.mulf %300, %302 : vector<2x32xf32>
    %306 = arith.addf %304, %305 : vector<2x32xf32>
    %307 = math.tanh %306 : vector<2x32xf32>
    %308 = arith.mulf %303, %307 : vector<2x32xf32>
    %c5_92 = arith.constant 5 : index
    %c0_93 = arith.constant 0 : index
    %c0_94 = arith.constant 0 : index
    %309 = vector.load %arg14[%c5_92, %c0_93, %c0_94] : memref<8x2x32xf32, #tpu.memory_space<vmem>>, vector<1x2x32xf32>
    %310 = vector.shape_cast %309 : vector<1x2x32xf32> to vector<2x32xf32>
    %311 = vector.shape_cast %308 : vector<2x32xf32> to vector<1x2x32xf32>
    tpu.vector_store %arg14[%c5_92, %c0_93, %c0_94], %311 {strides = array<i32>} : memref<8x2x32xf32, #tpu.memory_space<vmem>>, vector<1x2x32xf32>,
    %312 = arith.truncf %286 : vector<2x32xf32> to vector<2x32xbf16>
    %cst_95 = arith.constant dense<0.000000e+00> : vector<2x128xf32>
    %313 = tpu.matmul %312, %1, %cst_95 {dimension_numbers = #tpu.dot_dimension_numbers<[1], [0], [0], [1], [0, 0, 1, 1], [], []>} : vector<2x32xbf16>, vector<32x128xbf16>, vector<2x128xf32> -> vector<2x128xf32>
    %314 = arith.addf %40, %313 : vector<2x128xf32>
    %315 = arith.negf %314 : vector<2x128xf32>
    %316 = math.exp %315 : vector<2x128xf32>
    %cst_96 = arith.constant 1.000000e+00 : f32
    %317 = vector.broadcast %cst_96 : f32 to vector<2x128xf32>
    %318 = arith.addf %317, %316 : vector<2x128xf32>
    %319 = arith.divf %317, %318 : vector<2x128xf32>
    %320 = math.tanh %314 : vector<2x128xf32>
    %321 = vector.extract_strided_slice %319 {offsets = [0, 0], sizes = [2, 32], strides = [1, 1]} : vector<2x128xf32> to vector<2x32xf32>
    %322 = vector.extract_strided_slice %319 {offsets = [0, 32], sizes = [2, 32], strides = [1, 1]} : vector<2x128xf32> to vector<2x32xf32>
    %323 = vector.extract_strided_slice %320 {offsets = [0, 64], sizes = [2, 32], strides = [1, 1]} : vector<2x128xf32> to vector<2x32xf32>
    %324 = vector.extract_strided_slice %319 {offsets = [0, 96], sizes = [2, 32], strides = [1, 1]} : vector<2x128xf32> to vector<2x32xf32>
    %325 = arith.mulf %322, %284 : vector<2x32xf32>
    %326 = arith.mulf %321, %323 : vector<2x32xf32>
    %327 = arith.addf %325, %326 : vector<2x32xf32>
    %328 = math.tanh %327 : vector<2x32xf32>
    %329 = arith.mulf %324, %328 : vector<2x32xf32>
    %330 = arith.truncf %329 : vector<2x32xf32> to vector<2x32xbf16>
    %cst_97 = arith.constant dense<0.000000e+00> : vector<2x128xf32>
    %331 = tpu.matmul %330, %3, %cst_97 {dimension_numbers = #tpu.dot_dimension_numbers<[1], [0], [0], [1], [0, 0, 1, 1], [], []>} : vector<2x32xbf16>, vector<32x128xbf16>, vector<2x128xf32> -> vector<2x128xf32>
    %332 = arith.truncf %308 : vector<2x32xf32> to vector<2x32xbf16>
    %cst_98 = arith.constant dense<0.000000e+00> : vector<2x128xf32>
    %333 = tpu.matmul %332, %4, %cst_98 {dimension_numbers = #tpu.dot_dimension_numbers<[1], [0], [0], [1], [0, 0, 1, 1], [], []>} : vector<2x32xbf16>, vector<32x128xbf16>, vector<2x128xf32> -> vector<2x128xf32>
    %334 = arith.addf %331, %333 : vector<2x128xf32>
    %335 = vector.broadcast %5 : vector<1x128xf32> to vector<2x128xf32>
    %336 = arith.addf %334, %335 : vector<2x128xf32>
    %337 = arith.negf %336 : vector<2x128xf32>
    %338 = math.exp %337 : vector<2x128xf32>
    %cst_99 = arith.constant 1.000000e+00 : f32
    %339 = vector.broadcast %cst_99 : f32 to vector<2x128xf32>
    %340 = arith.addf %339, %338 : vector<2x128xf32>
    %341 = arith.divf %339, %340 : vector<2x128xf32>
    %342 = math.tanh %336 : vector<2x128xf32>
    %343 = vector.extract_strided_slice %341 {offsets = [0, 0], sizes = [2, 32], strides = [1, 1]} : vector<2x128xf32> to vector<2x32xf32>
    %344 = vector.extract_strided_slice %341 {offsets = [0, 32], sizes = [2, 32], strides = [1, 1]} : vector<2x128xf32> to vector<2x32xf32>
    %345 = vector.extract_strided_slice %342 {offsets = [0, 64], sizes = [2, 32], strides = [1, 1]} : vector<2x128xf32> to vector<2x32xf32>
    %346 = vector.extract_strided_slice %341 {offsets = [0, 96], sizes = [2, 32], strides = [1, 1]} : vector<2x128xf32> to vector<2x32xf32>
    %347 = arith.mulf %344, %306 : vector<2x32xf32>
    %348 = arith.mulf %343, %345 : vector<2x32xf32>
    %349 = arith.addf %347, %348 : vector<2x32xf32>
    %350 = math.tanh %349 : vector<2x32xf32>
    %351 = arith.mulf %346, %350 : vector<2x32xf32>
    %c6_100 = arith.constant 6 : index
    %c0_101 = arith.constant 0 : index
    %c0_102 = arith.constant 0 : index
    %352 = vector.load %arg14[%c6_100, %c0_101, %c0_102] : memref<8x2x32xf32, #tpu.memory_space<vmem>>, vector<1x2x32xf32>
    %353 = vector.shape_cast %352 : vector<1x2x32xf32> to vector<2x32xf32>
    %354 = vector.shape_cast %351 : vector<2x32xf32> to vector<1x2x32xf32>
    tpu.vector_store %arg14[%c6_100, %c0_101, %c0_102], %354 {strides = array<i32>} : memref<8x2x32xf32, #tpu.memory_space<vmem>>, vector<1x2x32xf32>,
    %355 = arith.truncf %329 : vector<2x32xf32> to vector<2x32xbf16>
    %cst_103 = arith.constant dense<0.000000e+00> : vector<2x128xf32>
    %356 = tpu.matmul %355, %1, %cst_103 {dimension_numbers = #tpu.dot_dimension_numbers<[1], [0], [0], [1], [0, 0, 1, 1], [], []>} : vector<2x32xbf16>, vector<32x128xbf16>, vector<2x128xf32> -> vector<2x128xf32>
    %357 = arith.addf %45, %356 : vector<2x128xf32>
    %358 = arith.negf %357 : vector<2x128xf32>
    %359 = math.exp %358 : vector<2x128xf32>
    %cst_104 = arith.constant 1.000000e+00 : f32
    %360 = vector.broadcast %cst_104 : f32 to vector<2x128xf32>
    %361 = arith.addf %360, %359 : vector<2x128xf32>
    %362 = arith.divf %360, %361 : vector<2x128xf32>
    %363 = math.tanh %357 : vector<2x128xf32>
    %364 = vector.extract_strided_slice %362 {offsets = [0, 0], sizes = [2, 32], strides = [1, 1]} : vector<2x128xf32> to vector<2x32xf32>
    %365 = vector.extract_strided_slice %362 {offsets = [0, 32], sizes = [2, 32], strides = [1, 1]} : vector<2x128xf32> to vector<2x32xf32>
    %366 = vector.extract_strided_slice %363 {offsets = [0, 64], sizes = [2, 32], strides = [1, 1]} : vector<2x128xf32> to vector<2x32xf32>
    %367 = vector.extract_strided_slice %362 {offsets = [0, 96], sizes = [2, 32], strides = [1, 1]} : vector<2x128xf32> to vector<2x32xf32>
    %368 = arith.mulf %365, %327 : vector<2x32xf32>
    %369 = arith.mulf %364, %366 : vector<2x32xf32>
    %370 = arith.addf %368, %369 : vector<2x32xf32>
    %371 = math.tanh %370 : vector<2x32xf32>
    %372 = arith.mulf %367, %371 : vector<2x32xf32>
    %373 = arith.truncf %372 : vector<2x32xf32> to vector<2x32xbf16>
    %cst_105 = arith.constant dense<0.000000e+00> : vector<2x128xf32>
    %374 = tpu.matmul %373, %3, %cst_105 {dimension_numbers = #tpu.dot_dimension_numbers<[1], [0], [0], [1], [0, 0, 1, 1], [], []>} : vector<2x32xbf16>, vector<32x128xbf16>, vector<2x128xf32> -> vector<2x128xf32>
    %375 = arith.truncf %351 : vector<2x32xf32> to vector<2x32xbf16>
    %cst_106 = arith.constant dense<0.000000e+00> : vector<2x128xf32>
    %376 = tpu.matmul %375, %4, %cst_106 {dimension_numbers = #tpu.dot_dimension_numbers<[1], [0], [0], [1], [0, 0, 1, 1], [], []>} : vector<2x32xbf16>, vector<32x128xbf16>, vector<2x128xf32> -> vector<2x128xf32>
    %377 = arith.addf %374, %376 : vector<2x128xf32>
    %378 = vector.broadcast %5 : vector<1x128xf32> to vector<2x128xf32>
    %379 = arith.addf %377, %378 : vector<2x128xf32>
    %380 = arith.negf %379 : vector<2x128xf32>
    %381 = math.exp %380 : vector<2x128xf32>
    %cst_107 = arith.constant 1.000000e+00 : f32
    %382 = vector.broadcast %cst_107 : f32 to vector<2x128xf32>
    %383 = arith.addf %382, %381 : vector<2x128xf32>
    %384 = arith.divf %382, %383 : vector<2x128xf32>
    %385 = math.tanh %379 : vector<2x128xf32>
    %386 = vector.extract_strided_slice %384 {offsets = [0, 0], sizes = [2, 32], strides = [1, 1]} : vector<2x128xf32> to vector<2x32xf32>
    %387 = vector.extract_strided_slice %384 {offsets = [0, 32], sizes = [2, 32], strides = [1, 1]} : vector<2x128xf32> to vector<2x32xf32>
    %388 = vector.extract_strided_slice %385 {offsets = [0, 64], sizes = [2, 32], strides = [1, 1]} : vector<2x128xf32> to vector<2x32xf32>
    %389 = vector.extract_strided_slice %384 {offsets = [0, 96], sizes = [2, 32], strides = [1, 1]} : vector<2x128xf32> to vector<2x32xf32>
    %390 = arith.mulf %387, %349 : vector<2x32xf32>
    %391 = arith.mulf %386, %388 : vector<2x32xf32>
    %392 = arith.addf %390, %391 : vector<2x32xf32>
    %393 = math.tanh %392 : vector<2x32xf32>
    %394 = arith.mulf %389, %393 : vector<2x32xf32>
    %c7_108 = arith.constant 7 : index
    %c0_109 = arith.constant 0 : index
    %c0_110 = arith.constant 0 : index
    %395 = vector.load %arg14[%c7_108, %c0_109, %c0_110] : memref<8x2x32xf32, #tpu.memory_space<vmem>>, vector<1x2x32xf32>
    %396 = vector.shape_cast %395 : vector<1x2x32xf32> to vector<2x32xf32>
    %397 = vector.shape_cast %394 : vector<2x32xf32> to vector<1x2x32xf32>
    tpu.vector_store %arg14[%c7_108, %c0_109, %c0_110], %397 {strides = array<i32>} : memref<8x2x32xf32, #tpu.memory_space<vmem>>, vector<1x2x32xf32>,
    %c0_111 = arith.constant 0 : index
    %c0_112 = arith.constant 0 : index
    %c0_113 = arith.constant 0 : index
    %398 = vector.load %arg12[%c0_111, %c0_112, %c0_113] : memref<2x2x32xf32, #tpu.memory_space<vmem>>, vector<1x2x32xf32>
    %399 = vector.shape_cast %398 : vector<1x2x32xf32> to vector<2x32xf32>
    %400 = vector.shape_cast %372 : vector<2x32xf32> to vector<1x2x32xf32>
    tpu.vector_store %arg12[%c0_111, %c0_112, %c0_113], %400 {strides = array<i32>} : memref<2x2x32xf32, #tpu.memory_space<vmem>>, vector<1x2x32xf32>,
    %c0_114 = arith.constant 0 : index
    %c0_115 = arith.constant 0 : index
    %c0_116 = arith.constant 0 : index
    %401 = vector.load %arg13[%c0_114, %c0_115, %c0_116] : memref<2x2x32xf32, #tpu.memory_space<vmem>>, vector<1x2x32xf32>
    %402 = vector.shape_cast %401 : vector<1x2x32xf32> to vector<2x32xf32>
    %403 = vector.shape_cast %370 : vector<2x32xf32> to vector<1x2x32xf32>
    tpu.vector_store %arg13[%c0_114, %c0_115, %c0_116], %403 {strides = array<i32>} : memref<2x2x32xf32, #tpu.memory_space<vmem>>, vector<1x2x32xf32>,
    %c1_117 = arith.constant 1 : index
    %c0_118 = arith.constant 0 : index
    %c0_119 = arith.constant 0 : index
    %404 = vector.load %arg12[%c1_117, %c0_118, %c0_119] : memref<2x2x32xf32, #tpu.memory_space<vmem>>, vector<1x2x32xf32>
    %405 = vector.shape_cast %404 : vector<1x2x32xf32> to vector<2x32xf32>
    %406 = vector.shape_cast %394 : vector<2x32xf32> to vector<1x2x32xf32>
    tpu.vector_store %arg12[%c1_117, %c0_118, %c0_119], %406 {strides = array<i32>} : memref<2x2x32xf32, #tpu.memory_space<vmem>>, vector<1x2x32xf32>,
    %c1_120 = arith.constant 1 : index
    %c0_121 = arith.constant 0 : index
    %c0_122 = arith.constant 0 : index
    %407 = vector.load %arg13[%c1_120, %c0_121, %c0_122] : memref<2x2x32xf32, #tpu.memory_space<vmem>>, vector<1x2x32xf32>
    %408 = vector.shape_cast %407 : vector<1x2x32xf32> to vector<2x32xf32>
    %409 = vector.shape_cast %392 : vector<2x32xf32> to vector<1x2x32xf32>
    tpu.vector_store %arg13[%c1_120, %c0_121, %c0_122], %409 {strides = array<i32>} : memref<2x2x32xf32, #tpu.memory_space<vmem>>, vector<1x2x32xf32>,
    %c0_123 = arith.constant 0 : index
    %c0_124 = arith.constant 0 : index
    %c0_125 = arith.constant 0 : index
    %410 = vector.load %arg14[%c0_123, %c0_124, %c0_125] : memref<8x2x32xf32, #tpu.memory_space<vmem>>, vector<8x2x32xf32>
    %c0_126 = arith.constant 0 : index
    %c0_127 = arith.constant 0 : index
    %c0_128 = arith.constant 0 : index
    %411 = vector.load %arg9[%c0_126, %c0_127, %c0_128] : memref<1x1x32xf32, #tpu.memory_space<vmem>>, vector<1x1x32xf32>
    %412 = vector.broadcast %411 : vector<1x1x32xf32> to vector<8x2x32xf32>
    %413 = arith.mulf %410, %412 : vector<8x2x32xf32>
    %cst_129 = arith.constant dense<0.000000e+00> : vector<8x2xf32>
    %414 = vector.multi_reduction <add>, %413, %cst_129 [2] : vector<8x2x32xf32> to vector<8x2xf32>
    %415 = vector.shape_cast %414 : vector<8x2xf32> to vector<8x2x1xf32>
    %c0_130 = arith.constant 0 : index
    %c0_131 = arith.constant 0 : index
    %c0_132 = arith.constant 0 : index
    %416 = vector.load %arg10[%c0_130, %c0_131, %c0_132] : memref<1x1x1xf32, #tpu.memory_space<vmem>>, vector<1x1x1xf32>
    %417 = vector.broadcast %416 : vector<1x1x1xf32> to vector<8x2x1xf32>
    %418 = arith.addf %415, %417 : vector<8x2x1xf32>
    %419 = arith.negf %418 : vector<8x2x1xf32>
    %420 = math.exp %419 : vector<8x2x1xf32>
    %cst_133 = arith.constant 1.000000e+00 : f32
    %421 = vector.broadcast %cst_133 : f32 to vector<8x2x1xf32>
    %422 = arith.addf %421, %420 : vector<8x2x1xf32>
    %423 = arith.divf %421, %422 : vector<8x2x1xf32>
    %c0_134 = arith.constant 0 : index
    %c0_135 = arith.constant 0 : index
    %c0_136 = arith.constant 0 : index
    %424 = vector.load %arg11[%c0_134, %c0_135, %c0_136] : memref<8x2x1xf32, #tpu.memory_space<vmem>>, vector<8x2x1xf32>
    tpu.vector_store %arg11[%c0_134, %c0_135, %c0_136], %423 {strides = array<i32>} : memref<8x2x1xf32, #tpu.memory_space<vmem>>, vector<8x2x1xf32>,
    return
  }
}

</mosaic_0001>

<llo_original>
// kernel: tpu_custom_call.1
$region0: #{tpu_custom_call.1}
  #allocation0 [shape = 'u32[]', space=smem, size = 0x4, offset = 0x4, fixed_abs, tag = 'smem constant byte address 0x4 - core index']
  #allocation1 [shape = 'u32[144,128]{1,0:T(1,128)}', space=vmem, size = 0x12000, scoped, tag = 'internal scratch']
  #allocation2 [shape = 'f32[8,2,32]{2,1,0:T(2,128)}', space=vmem, size = 0x2000, scoped, tag = 'scratch operand']
  #allocation3 [shape = 'f32[1,1,1]{2,1,0:T(1,128)S(1)}', space=vmem, size = 0x200, scoped, tag = 'scoped memory for tpu_custom_call.1']
  %s0 = inlined_call_operand.hbm [shape: bf16[8,2,8], index: 0, kind: input, shape index: {}]
  %s1 = inlined_call_operand.hbm [shape: f32[2,2,32], index: 1, kind: input, shape index: {}]
  %s2 = inlined_call_operand.vmem [shape: f32[2,2,32], index: 2, kind: input, shape index: {}]
  %s3 = inlined_call_operand.hbm [shape: bf16[8,128], index: 3, kind: input, shape index: {}]
  %s4 = inlined_call_operand.hbm [shape: bf16[32,128], index: 4, kind: input, shape index: {}]
  %s5 = inlined_call_operand.vmem [shape: f32[1,128], index: 5, kind: input, shape index: {}]
  %s6 = inlined_call_operand.hbm [shape: bf16[32,128], index: 6, kind: input, shape index: {}]
  %s7 = inlined_call_operand.hbm [shape: bf16[32,128], index: 7, kind: input, shape index: {}]
  %s8 = inlined_call_operand.vmem [shape: f32[1,128], index: 8, kind: input, shape index: {}]
  %s9 = inlined_call_operand.vmem [shape: f32[1,1,32], index: 9, kind: input, shape index: {}]
  %s10 = inlined_call_operand.<no memory space> [shape: f32[1,1,1], index: 10, kind: input, shape index: {}]
  %s11 = inlined_call_operand.vmem [shape: f32[8,2,1], index: 11, kind: output, shape index: {0}]
  %s12 = inlined_call_operand.hbm [shape: f32[2,2,32], index: 12, kind: output, shape index: {1}]
  %s13 = inlined_call_operand.hbm [shape: f32[2,2,32], index: 13, kind: output, shape index: {2}]
  %14 = xla_tuple %s11, %s12, %s13
  %s15 = sld [smem:[#allocation0]]
  $region94: #{tpu_custom_call.1} parent=0
    _
  %s17 = ssub.s32 1, %s15
  %s18 = scalar_select 0, %s17, %s15
  %v19 = vstv %s10
  %20 = vst [vmem:[#allocation3] sm:$0x1] %v19
  $region1: #{tpu_custom_call.1} parent=0
    #allocation4 [shape = 'u8[4096]{0}', space=vmem, size = 0x1000, scoped, tag = 'input window, operand 0, single buffered']
    #allocation5 [shape = 's32[1]{0}', space=sflag, size = 0x4, scoped, tag = 'scoped memory for tpu_custom_call.1']
    #allocation6 [shape = 's32[1]{0}', space=sflag, size = 0x4, scoped, tag = 'scoped memory for tpu_custom_call.1']
    #allocation7 [shape = 'u8[2048]{0}', space=vmem, size = 0x800, scoped, tag = 'input window, operand 1, single buffered']
    #allocation8 [shape = 's32[1]{0}', space=sflag, size = 0x4, scoped, tag = 'scoped memory for tpu_custom_call.1']
    #allocation9 [shape = 'u8[2048]{0}', space=vmem, size = 0x800, scoped, tag = 'input window, operand 3, single buffered']
    #allocation10 [shape = 'u8[8192]{0}', space=vmem, size = 0x2000, scoped, tag = 'input window, operand 4, single buffered']
    #allocation11 [shape = 's32[1]{0}', space=sflag, size = 0x4, scoped, tag = 'scoped memory for tpu_custom_call.1']
    #allocation12 [shape = 'u8[8192]{0}', space=vmem, size = 0x2000, scoped, tag = 'input window, operand 6, single buffered']
    #allocation13 [shape = 'u8[8192]{0}', space=vmem, size = 0x2000, scoped, tag = 'input window, operand 7, single buffered']
    #allocation14 [shape = 's32[1]{0}', space=sflag, size = 0x4, scoped, tag = 'scoped memory for tpu_custom_call.1']
    #allocation15 [shape = 'u8[2048]{0}', space=vmem, size = 0x800, scoped, tag = 'output window, operand 1, single buffered']
    #allocation16 [shape = 'u8[2048]{0}', space=vmem, size = 0x800, scoped, tag = 'output window, operand 2, single buffered']
    #allocation17 [shape = 's32[1]{0}', space=sflag, size = 0x4, scoped, tag = 'scoped memory for tpu_custom_call.1']
    %21 = vsyncpa [#allocation5], 0
    %22 = vsyncpa [#allocation8], 0
    %23 = vsyncpa [#allocation11], 0
    %24 = vsyncpa [#allocation14], 0
    %25 = vsyncpa [#allocation6], 0
    %26 = vsyncpa [#allocation17], 0
    // Predicated region
    $region2: #{tpu_custom_call.1} parent=1 // pred_check
      _
    $region3: #{tpu_custom_call.1} parent=1 // pred_check_branch
      %28 = sbr.rel (0) target = $region5
    $region4: #{tpu_custom_call.1} parent=1 // pred_region
      %s30 = ssub.s32 128, 128
      %31 = vsyncadd [#allocation5], %s30
      %s32 = sshll.u32 [#allocation4], 4
      %s33 = int_to_ptr.vmem [resolvable:$true] %s32
      %38 = dma.hbm_to_vmem [thread:$0]  %s0, 128, %s33, [#allocation5], 16, 16, 1
    $region5: #{tpu_custom_call.1} parent=1 // pred_fallthru
      _
    // Predicated region
    $region6: #{tpu_custom_call.1} parent=1 // pred_check
      _
    $region7: #{tpu_custom_call.1} parent=1 // pred_check_branch
      %40 = sbr.rel (0) target = $region9
    $region8: #{tpu_custom_call.1} parent=1 // pred_region
      %s42 = ssub.s32 64, 64
      %43 = vsyncadd [#allocation8], %s42
      %s44 = sshll.u32 [#allocation7], 4
      %s45 = int_to_ptr.vmem [resolvable:$true] %s44
      %50 = dma.hbm_to_vmem [thread:$0]  %s1, 64, %s45, [#allocation8], 32, 32, 2
    $region9: #{tpu_custom_call.1} parent=1 // pred_fallthru
      _
    // Predicated region
    $region10: #{tpu_custom_call.1} parent=1 // pred_check
      _
    $region11: #{tpu_custom_call.1} parent=1 // pred_check_branch
      %52 = sbr.rel (0) target = $region13
    $region12: #{tpu_custom_call.1} parent=1 // pred_region
      _
    $region13: #{tpu_custom_call.1} parent=1 // pred_fallthru
      _
    // Predicated region
    $region14: #{tpu_custom_call.1} parent=1 // pred_check
      _
    $region15: #{tpu_custom_call.1} parent=1 // pred_check_branch
      %54 = sbr.rel (0) target = $region17
    $region16: #{tpu_custom_call.1} parent=1 // pred_region
      %s56 = ssub.s32 64, 64
      %57 = vsyncadd [#allocation8], %s56
      %s59 = sshll.u32 [#allocation9], 4
      %s60 = int_to_ptr.vmem [resolvable:$true] %s59
      %62 = dma.hbm_to_vmem [thread:$0]  %s3, 64, %s60, [#allocation8]
    $region17: #{tpu_custom_call.1} parent=1 // pred_fallthru
      _
    // Predicated region
    $region18: #{tpu_custom_call.1} parent=1 // pred_check
      _
    $region19: #{tpu_custom_call.1} parent=1 // pred_check_branch
      %64 = sbr.rel (0) target = $region21
    $region20: #{tpu_custom_call.1} parent=1 // pred_region
      %s66 = ssub.s32 256, 256
      %67 = vsyncadd [#allocation11], %s66
      %s68 = sshll.u32 [#allocation10], 4
      %s69 = int_to_ptr.vmem [resolvable:$true] %s68
      %74 = dma.hbm_to_vmem [thread:$0]  %s4, 256, %s69, [#allocation11], 64, 64, 4
    $region21: #{tpu_custom_call.1} parent=1 // pred_fallthru
      _
    // Predicated region
    $region22: #{tpu_custom_call.1} parent=1 // pred_check
      _
    $region23: #{tpu_custom_call.1} parent=1 // pred_check_branch
      %76 = sbr.rel (0) target = $region25
    $region24: #{tpu_custom_call.1} parent=1 // pred_region
      _
    $region25: #{tpu_custom_call.1} parent=1 // pred_fallthru
      _
    // Predicated region
    $region26: #{tpu_custom_call.1} parent=1 // pred_check
      _
    $region27: #{tpu_custom_call.1} parent=1 // pred_check_branch
      %78 = sbr.rel (0) target = $region29
    $region28: #{tpu_custom_call.1} parent=1 // pred_region
      %s80 = ssub.s32 256, 256
      %81 = vsyncadd [#allocation11], %s80
      %s82 = sshll.u32 [#allocation12], 4
      %s83 = int_to_ptr.vmem [resolvable:$true] %s82
      %88 = dma.hbm_to_vmem [thread:$0]  %s6, 256, %s83, [#allocation11], 64, 64, 4
    $region29: #{tpu_custom_call.1} parent=1 // pred_fallthru
      _
    // Predicated region
    $region30: #{tpu_custom_call.1} parent=1 // pred_check
      _
    $region31: #{tpu_custom_call.1} parent=1 // pred_check_branch
      %90 = sbr.rel (0) target = $region33
    $region32: #{tpu_custom_call.1} parent=1 // pred_region
      %s92 = ssub.s32 256, 256
      %93 = vsyncadd [#allocation14], %s92
      %s94 = sshll.u32 [#allocation13], 4
      %s95 = int_to_ptr.vmem [resolvable:$true] %s94
      %100 = dma.hbm_to_vmem [thread:$0]  %s7, 256, %s95, [#allocation14], 64, 64, 4
    $region33: #{tpu_custom_call.1} parent=1 // pred_fallthru
      _
    // Predicated region
    $region34: #{tpu_custom_call.1} parent=1 // pred_check
      _
    $region35: #{tpu_custom_call.1} parent=1 // pred_check_branch
      %102 = sbr.rel (0) target = $region37
    $region36: #{tpu_custom_call.1} parent=1 // pred_region
      _
    $region37: #{tpu_custom_call.1} parent=1 // pred_fallthru
      _
    // Predicated region
    $region38: #{tpu_custom_call.1} parent=1 // pred_check
      _
    $region39: #{tpu_custom_call.1} parent=1 // pred_check_branch
      %104 = sbr.rel (0) target = $region41
    $region40: #{tpu_custom_call.1} parent=1 // pred_region
      _
    $region41: #{tpu_custom_call.1} parent=1 // pred_fallthru
      _
    // Predicated region
    $region42: #{tpu_custom_call.1} parent=1 // pred_check
      _
    $region43: #{tpu_custom_call.1} parent=1 // pred_check_branch
      %106 = sbr.rel (0) target = $region45
    $region44: #{tpu_custom_call.1} parent=1 // pred_region
      _
    $region45: #{tpu_custom_call.1} parent=1 // pred_fallthru
      _
    // Predicated region
    $region46: #{tpu_custom_call.1} parent=1 // pred_check
      _
    $region47: #{tpu_custom_call.1} parent=1 // pred_check_branch
      %108 = sbr.rel (0) target = $region49
    $region48: #{tpu_custom_call.1} parent=1 // pred_region
      %109 = dma.done [#allocation5], 128
    $region49: #{tpu_custom_call.1} parent=1 // pred_fallthru
      _
    // Predicated region
    $region50: #{tpu_custom_call.1} parent=1 // pred_check
      _
    $region51: #{tpu_custom_call.1} parent=1 // pred_check_branch
      %111 = sbr.rel (0) target = $region53
    $region52: #{tpu_custom_call.1} parent=1 // pred_region
      %112 = dma.done [#allocation8], 64
    $region53: #{tpu_custom_call.1} parent=1 // pred_fallthru
      _
    // Predicated region
    $region54: #{tpu_custom_call.1} parent=1 // pred_check
      _
    $region55: #{tpu_custom_call.1} parent=1 // pred_check_branch
      %114 = sbr.rel (0) target = $region57
    $region56: #{tpu_custom_call.1} parent=1 // pred_region
      %115 = dma.done [#allocation8], 64
    $region57: #{tpu_custom_call.1} parent=1 // pred_fallthru
      _
    // Predicated region
    $region58: #{tpu_custom_call.1} parent=1 // pred_check
      _
    $region59: #{tpu_custom_call.1} parent=1 // pred_check_branch
      %117 = sbr.rel (0) target = $region61
    $region60: #{tpu_custom_call.1} parent=1 // pred_region
      %118 = dma.done [#allocation11], 256
    $region61: #{tpu_custom_call.1} parent=1 // pred_fallthru
      _
    // Predicated region
    $region62: #{tpu_custom_call.1} parent=1 // pred_check
      _
    $region63: #{tpu_custom_call.1} parent=1 // pred_check_branch
      %120 = sbr.rel (0) target = $region65
    $region64: #{tpu_custom_call.1} parent=1 // pred_region
      %121 = dma.done [#allocation11], 256
    $region65: #{tpu_custom_call.1} parent=1 // pred_fallthru
      _
    // Predicated region
    $region66: #{tpu_custom_call.1} parent=1 // pred_check
      _
    $region67: #{tpu_custom_call.1} parent=1 // pred_check_branch
      %123 = sbr.rel (0) target = $region69
    $region68: #{tpu_custom_call.1} parent=1 // pred_region
      %124 = dma.done [#allocation14], 256
    $region69: #{tpu_custom_call.1} parent=1 // pred_fallthru
      _
    %v126 = vld [vmem:[#allocation9] sm:$0xf]
    %v127 = vld [vmem:[#allocation10] sm:$0xf]
    %v128 = vld [vmem:[#allocation10 + $0x4] sm:$0xf]
    %v129 = vld [vmem:[#allocation10 + $0x8] sm:$0xf]
    %v130 = vld [vmem:[#allocation10 + $0xc] sm:$0xf]
    %v131 = vld [vmem:[%s5] sm:$0x1]
    %v132 = vld [vmem:[#allocation12] sm:$0xf]
    %v133 = vld [vmem:[#allocation12 + $0x4] sm:$0xf]
    %v134 = vld [vmem:[#allocation12 + $0x8] sm:$0xf]
    %v135 = vld [vmem:[#allocation12 + $0xc] sm:$0xf]
    %v136 = vld [vmem:[#allocation13] sm:$0xf]
    %v137 = vld [vmem:[#allocation13 + $0x4] sm:$0xf]
    %v138 = vld [vmem:[#allocation13 + $0x8] sm:$0xf]
    %v139 = vld [vmem:[#allocation13 + $0xc] sm:$0xf]
    %v140 = vld [vmem:[%s8] sm:$0x1]
    %v141 = vld [vmem:[#allocation4] sm:$0x1]
    %v143 = vlaneseq
    %v144 = vshrl.u32 %v143, 7
    %v145 = vsub.s32 0, %v144
    %v146 = vrot.slane %v131, %v145
    %vm148 = vcmask 64512
    %v150 = vsel %vm148, %v141, 0
    %vm152 = vcmask 1043456
    %v154 = vsel %vm152, %v126, 0
    %156 = vmatprep.subr.bf16.mxu0 0
    %157 = vmatpush1.bf16.msra.mxu0 0
    %158 = vmatprep.subr.bf16.mxu0 0
    %159 = vmatpush1.bf16.msra.mxu0 0
    %160 = vmatprep.subr.bf16.mxu0 0
    %161 = vmatpush1.bf16.msra.mxu0 0
    %162 = vmatprep.subr.bf16.mxu0 0
    %163 = vmatpush1.bf16.msra.mxu0 0
    %164 = vmatprep.subr.bf16.mxu0 0
    %165 = vmatpush1.bf16.msra.mxu0 0
    %166 = vmatprep.subr.bf16.mxu0 0
    %167 = vmatpush1.bf16.msra.mxu0 0
    %168 = vmatprep.subr.bf16.mxu0 0
    %169 = vmatpush1.bf16.msra.mxu0 0
    %170 = vmatprep.subr.bf16.mxu0 0
    %171 = vmatpush1.bf16.msra.mxu0 %v154
    %172 = vmatprep.subr.bf16.mxu0 0
    %173 = vmatpush2.bf16.msra.mxu0 0
    %174 = vmatprep.subr.bf16.mxu0 0
    %175 = vmatpush2.bf16.msra.mxu0 0
    %176 = vmatprep.subr.bf16.mxu0 0
    %177 = vmatpush2.bf16.msra.mxu0 0
    %178 = vmatprep.subr.bf16.mxu0 0
    %179 = vmatpush2.bf16.msra.mxu0 0
    %180 = vmatprep.subr.bf16.mxu0 0
    %181 = vmatpush2.bf16.msra.mxu0 0
    %182 = vmatprep.subr.bf16.mxu0 0
    %183 = vmatpush2.bf16.msra.mxu0 0
    %184 = vmatprep.subr.bf16.mxu0 0
    %185 = vmatpush2.bf16.msra.mxu0 0
    %186 = vmatprep.subr.bf16.mxu0 0
    %187 = vmatpush2.bf16.msra.mxu0 0
    %188 = vmatprep.mubr.bf16.mxu0 0
    %189 = vmatmul.mubr.bf16.gmra.mxu0 %v150
    %v190 = vpop.f32.mrf.mxu0
    %v191 = vadd.f32 %v146, %v190
    %v192 = vpop.f32.mrf.mxu0
    %v193 = vpop.f32.mrf.mxu0
    %v194 = vpop.f32.mrf.mxu0
    %195 = vdwg.mxu0
    %s196 = scalar_lea.vmem [#allocation4], 1
    %v197 = vld [vmem:[%s196] sm:$0x1]
    %v199 = vsel %vm148, %v197, 0
    %201 = vmatprep.subr.bf16.mxu0 0
    %202 = vmatpush1.bf16.msra.mxu0 0
    %203 = vmatprep.subr.bf16.mxu0 0
    %204 = vmatpush1.bf16.msra.mxu0 0
    %205 = vmatprep.subr.bf16.mxu0 0
    %206 = vmatpush1.bf16.msra.mxu0 0
    %207 = vmatprep.subr.bf16.mxu0 0
    %208 = vmatpush1.bf16.msra.mxu0 0
    %209 = vmatprep.subr.bf16.mxu0 0
    %210 = vmatpush1.bf16.msra.mxu0 0
    %211 = vmatprep.subr.bf16.mxu0 0
    %212 = vmatpush1.bf16.msra.mxu0 0
    %213 = vmatprep.subr.bf16.mxu0 0
    %214 = vmatpush1.bf16.msra.mxu0 0
    %215 = vmatprep.subr.bf16.mxu0 0
    %216 = vmatpush1.bf16.msra.mxu0 %v154
    %217 = vmatprep.subr.bf16.mxu0 0
    %218 = vmatpush2.bf16.msra.mxu0 0
    %219 = vmatprep.subr.bf16.mxu0 0
    %220 = vmatpush2.bf16.msra.mxu0 0
    %221 = vmatprep.subr.bf16.mxu0 0
    %222 = vmatpush2.bf16.msra.mxu0 0
    %223 = vmatprep.subr.bf16.mxu0 0
    %224 = vmatpush2.bf16.msra.mxu0 0
    %225 = vmatprep.subr.bf16.mxu0 0
    %226 = vmatpush2.bf16.msra.mxu0 0
    %227 = vmatprep.subr.bf16.mxu0 0
    %228 = vmatpush2.bf16.msra.mxu0 0
    %229 = vmatprep.subr.bf16.mxu0 0
    %230 = vmatpush2.bf16.msra.mxu0 0
    %231 = vmatprep.subr.bf16.mxu0 0
    %232 = vmatpush2.bf16.msra.mxu0 0
    %233 = vmatprep.mubr.bf16.mxu0 0
    %234 = vmatmul.mubr.bf16.gmra.mxu0 %v199
    %v235 = vpop.f32.mrf.mxu0
    %v236 = vadd.f32 %v146, %v235
    %v237 = vpop.f32.mrf.mxu0
    %v238 = vpop.f32.mrf.mxu0
    %v239 = vpop.f32.mrf.mxu0
    %240 = vdwg.mxu0
    %s241 = scalar_lea.vmem [#allocation4], 2
    %v242 = vld [vmem:[%s241] sm:$0x1]
    %v244 = vsel %vm148, %v242, 0
    %246 = vmatprep.subr.bf16.mxu0 0
    %247 = vmatpush1.bf16.msra.mxu0 0
    %248 = vmatprep.subr.bf16.mxu0 0
    %249 = vmatpush1.bf16.msra.mxu0 0
    %250 = vmatprep.subr.bf16.mxu0 0
    %251 = vmatpush1.bf16.msra.mxu0 0
    %252 = vmatprep.subr.bf16.mxu0 0
    %253 = vmatpush1.bf16.msra.mxu0 0
    %254 = vmatprep.subr.bf16.mxu0 0
    %255 = vmatpush1.bf16.msra.mxu0 0
    %256 = vmatprep.subr.bf16.mxu0 0
    %257 = vmatpush1.bf16.msra.mxu0 0
    %258 = vmatprep.subr.bf16.mxu0 0
    %259 = vmatpush1.bf16.msra.mxu0 0
    %260 = vmatprep.subr.bf16.mxu0 0
    %261 = vmatpush1.bf16.msra.mxu0 %v154
    %262 = vmatprep.subr.bf16.mxu0 0
    %263 = vmatpush2.bf16.msra.mxu0 0
    %264 = vmatprep.subr.bf16.mxu0 0
    %265 = vmatpush2.bf16.msra.mxu0 0
    %266 = vmatprep.subr.bf16.mxu0 0
    %267 = vmatpush2.bf16.msra.mxu0 0
    %268 = vmatprep.subr.bf16.mxu0 0
    %269 = vmatpush2.bf16.msra.mxu0 0
    %270 = vmatprep.subr.bf16.mxu0 0
    %271 = vmatpush2.bf16.msra.mxu0 0
    %272 = vmatprep.subr.bf16.mxu0 0
    %273 = vmatpush2.bf16.msra.mxu0 0
    %274 = vmatprep.subr.bf16.mxu0 0
    %275 = vmatpush2.bf16.msra.mxu0 0
    %276 = vmatprep.subr.bf16.mxu0 0
    %277 = vmatpush2.bf16.msra.mxu0 0
    %278 = vmatprep.mubr.bf16.mxu0 0
    %279 = vmatmul.mubr.bf16.gmra.mxu0 %v244
    %v280 = vpop.f32.mrf.mxu0
    %v281 = vadd.f32 %v146, %v280
    %v282 = vpop.f32.mrf.mxu0
    %v283 = vpop.f32.mrf.mxu0
    %v284 = vpop.f32.mrf.mxu0
    %285 = vdwg.mxu0
    %s286 = scalar_lea.vmem [#allocation4], 3
    %v287 = vld [vmem:[%s286] sm:$0x1]
    %v289 = vsel %vm148, %v287, 0
    %291 = vmatprep.subr.bf16.mxu0 0
    %292 = vmatpush1.bf16.msra.mxu0 0
    %293 = vmatprep.subr.bf16.mxu0 0
    %294 = vmatpush1.bf16.msra.mxu0 0
    %295 = vmatprep.subr.bf16.mxu0 0
    %296 = vmatpush1.bf16.msra.mxu0 0
    %297 = vmatprep.subr.bf16.mxu0 0
    %298 = vmatpush1.bf16.msra.mxu0 0
    %299 = vmatprep.subr.bf16.mxu0 0
    %300 = vmatpush1.bf16.msra.mxu0 0
    %301 = vmatprep.subr.bf16.mxu0 0
    %302 = vmatpush1.bf16.msra.mxu0 0
    %303 = vmatprep.subr.bf16.mxu0 0
    %304 = vmatpush1.bf16.msra.mxu0 0
    %305 = vmatprep.subr.bf16.mxu0 0
    %306 = vmatpush1.bf16.msra.mxu0 %v154
    %307 = vmatprep.subr.bf16.mxu0 0
    %308 = vmatpush2.bf16.msra.mxu0 0
    %309 = vmatprep.subr.bf16.mxu0 0
    %310 = vmatpush2.bf16.msra.mxu0 0
    %311 = vmatprep.subr.bf16.mxu0 0
    %312 = vmatpush2.bf16.msra.mxu0 0
    %313 = vmatprep.subr.bf16.mxu0 0
    %314 = vmatpush2.bf16.msra.mxu0 0
    %315 = vmatprep.subr.bf16.mxu0 0
    %316 = vmatpush2.bf16.msra.mxu0 0
    %317 = vmatprep.subr.bf16.mxu0 0
    %318 = vmatpush2.bf16.msra.mxu0 0
    %319 = vmatprep.subr.bf16.mxu0 0
    %320 = vmatpush2.bf16.msra.mxu0 0
    %321 = vmatprep.subr.bf16.mxu0 0
    %322 = vmatpush2.bf16.msra.mxu0 0
    %323 = vmatprep.mubr.bf16.mxu0 0
    %324 = vmatmul.mubr.bf16.gmra.mxu0 %v289
    %v325 = vpop.f32.mrf.mxu0
    %v326 = vadd.f32 %v146, %v325
    %v327 = vpop.f32.mrf.mxu0
    %v328 = vpop.f32.mrf.mxu0
    %v329 = vpop.f32.mrf.mxu0
    %330 = vdwg.mxu0
    %s331 = scalar_lea.vmem [#allocation4], 4
    %v332 = vld [vmem:[%s331] sm:$0x1]
    %v334 = vsel %vm148, %v332, 0
    %336 = vmatprep.subr.bf16.mxu0 0
    %337 = vmatpush1.bf16.msra.mxu0 0
    %338 = vmatprep.subr.bf16.mxu0 0
    %339 = vmatpush1.bf16.msra.mxu0 0
    %340 = vmatprep.subr.bf16.mxu0 0
    %341 = vmatpush1.bf16.msra.mxu0 0
    %342 = vmatprep.subr.bf16.mxu0 0
    %343 = vmatpush1.bf16.msra.mxu0 0
    %344 = vmatprep.subr.bf16.mxu0 0
    %345 = vmatpush1.bf16.msra.mxu0 0
    %346 = vmatprep.subr.bf16.mxu0 0
    %347 = vmatpush1.bf16.msra.mxu0 0
    %348 = vmatprep.subr.bf16.mxu0 0
    %349 = vmatpush1.bf16.msra.mxu0 0
    %350 = vmatprep.subr.bf16.mxu0 0
    %351 = vmatpush1.bf16.msra.mxu0 %v154
    %352 = vmatprep.subr.bf16.mxu0 0
    %353 = vmatpush2.bf16.msra.mxu0 0
    %354 = vmatprep.subr.bf16.mxu0 0
    %355 = vmatpush2.bf16.msra.mxu0 0
    %356 = vmatprep.subr.bf16.mxu0 0
    %357 = vmatpush2.bf16.msra.mxu0 0
    %358 = vmatprep.subr.bf16.mxu0 0
    %359 = vmatpush2.bf16.msra.mxu0 0
    %360 = vmatprep.subr.bf16.mxu0 0
    %361 = vmatpush2.bf16.msra.mxu0 0
    %362 = vmatprep.subr.bf16.mxu0 0
    %363 = vmatpush2.bf16.msra.mxu0 0
    %364 = vmatprep.subr.bf16.mxu0 0
    %365 = vmatpush2.bf16.msra.mxu0 0
    %366 = vmatprep.subr.bf16.mxu0 0
    %367 = vmatpush2.bf16.msra.mxu0 0
    %368 = vmatprep.mubr.bf16.mxu0 0
    %369 = vmatmul.mubr.bf16.gmra.mxu0 %v334
    %v370 = vpop.f32.mrf.mxu0
    %v371 = vadd.f32 %v146, %v370
    %v372 = vpop.f32.mrf.mxu0
    %v373 = vpop.f32.mrf.mxu0
    %v374 = vpop.f32.mrf.mxu0
    %375 = vdwg.mxu0
    %s376 = scalar_lea.vmem [#allocation4], 5
    %v377 = vld [vmem:[%s376] sm:$0x1]
    %v379 = vsel %vm148, %v377, 0
    %381 = vmatprep.subr.bf16.mxu0 0
    %382 = vmatpush1.bf16.msra.mxu0 0
    %383 = vmatprep.subr.bf16.mxu0 0
    %384 = vmatpush1.bf16.msra.mxu0 0
    %385 = vmatprep.subr.bf16.mxu0 0
    %386 = vmatpush1.bf16.msra.mxu0 0
    %387 = vmatprep.subr.bf16.mxu0 0
    %388 = vmatpush1.bf16.msra.mxu0 0
    %389 = vmatprep.subr.bf16.mxu0 0
    %390 = vmatpush1.bf16.msra.mxu0 0
    %391 = vmatprep.subr.bf16.mxu0 0
    %392 = vmatpush1.bf16.msra.mxu0 0
    %393 = vmatprep.subr.bf16.mxu0 0
    %394 = vmatpush1.bf16.msra.mxu0 0
    %395 = vmatprep.subr.bf16.mxu0 0
    %396 = vmatpush1.bf16.msra.mxu0 %v154
    %397 = vmatprep.subr.bf16.mxu0 0
    %398 = vmatpush2.bf16.msra.mxu0 0
    %399 = vmatprep.subr.bf16.mxu0 0
    %400 = vmatpush2.bf16.msra.mxu0 0
    %401 = vmatprep.subr.bf16.mxu0 0
    %402 = vmatpush2.bf16.msra.mxu0 0
    %403 = vmatprep.subr.bf16.mxu0 0
    %404 = vmatpush2.bf16.msra.mxu0 0
    %405 = vmatprep.subr.bf16.mxu0 0
    %406 = vmatpush2.bf16.msra.mxu0 0
    %407 = vmatprep.subr.bf16.mxu0 0
    %408 = vmatpush2.bf16.msra.mxu0 0
    %409 = vmatprep.subr.bf16.mxu0 0
    %410 = vmatpush2.bf16.msra.mxu0 0
    %411 = vmatprep.subr.bf16.mxu0 0
    %412 = vmatpush2.bf16.msra.mxu0 0
    %413 = vmatprep.mubr.bf16.mxu0 0
    %414 = vmatmul.mubr.bf16.gmra.mxu0 %v379
    %v415 = vpop.f32.mrf.mxu0
    %v416 = vadd.f32 %v146, %v415
    %v417 = vpop.f32.mrf.mxu0
    %v418 = vpop.f32.mrf.mxu0
    %v419 = vpop.f32.mrf.mxu0
    %420 = vdwg.mxu0
    %s421 = scalar_lea.vmem [#allocation4], 6
    %v422 = vld [vmem:[%s421] sm:$0x1]
    %v424 = vsel %vm148, %v422, 0
    %426 = vmatprep.subr.bf16.mxu0 0
    %427 = vmatpush1.bf16.msra.mxu0 0
    %428 = vmatprep.subr.bf16.mxu0 0
    %429 = vmatpush1.bf16.msra.mxu0 0
    %430 = vmatprep.subr.bf16.mxu0 0
    %431 = vmatpush1.bf16.msra.mxu0 0
    %432 = vmatprep.subr.bf16.mxu0 0
    %433 = vmatpush1.bf16.msra.mxu0 0
    %434 = vmatprep.subr.bf16.mxu0 0
    %435 = vmatpush1.bf16.msra.mxu0 0
    %436 = vmatprep.subr.bf16.mxu0 0
    %437 = vmatpush1.bf16.msra.mxu0 0
    %438 = vmatprep.subr.bf16.mxu0 0
    %439 = vmatpush1.bf16.msra.mxu0 0
    %440 = vmatprep.subr.bf16.mxu0 0
    %441 = vmatpush1.bf16.msra.mxu0 %v154
    %442 = vmatprep.subr.bf16.mxu0 0
    %443 = vmatpush2.bf16.msra.mxu0 0
    %444 = vmatprep.subr.bf16.mxu0 0
    %445 = vmatpush2.bf16.msra.mxu0 0
    %446 = vmatprep.subr.bf16.mxu0 0
    %447 = vmatpush2.bf16.msra.mxu0 0
    %448 = vmatprep.subr.bf16.mxu0 0
    %449 = vmatpush2.bf16.msra.mxu0 0
    %450 = vmatprep.subr.bf16.mxu0 0
    %451 = vmatpush2.bf16.msra.mxu0 0
    %452 = vmatprep.subr.bf16.mxu0 0
    %453 = vmatpush2.bf16.msra.mxu0 0
    %454 = vmatprep.subr.bf16.mxu0 0
    %455 = vmatpush2.bf16.msra.mxu0 0
    %456 = vmatprep.subr.bf16.mxu0 0
    %457 = vmatpush2.bf16.msra.mxu0 0
    %458 = vmatprep.mubr.bf16.mxu0 0
    %459 = vmatmul.mubr.bf16.gmra.mxu0 %v424
    %v460 = vpop.f32.mrf.mxu0
    %v461 = vadd.f32 %v146, %v460
    %v462 = vpop.f32.mrf.mxu0
    %v463 = vpop.f32.mrf.mxu0
    %v464 = vpop.f32.mrf.mxu0
    %465 = vdwg.mxu0
    %s466 = scalar_lea.vmem [#allocation4], 7
    %v467 = vld [vmem:[%s466] sm:$0x1]
    %v469 = vsel %vm148, %v467, 0
    %471 = vmatprep.subr.bf16.mxu0 0
    %472 = vmatpush1.bf16.msra.mxu0 0
    %473 = vmatprep.subr.bf16.mxu0 0
    %474 = vmatpush1.bf16.msra.mxu0 0
    %475 = vmatprep.subr.bf16.mxu0 0
    %476 = vmatpush1.bf16.msra.mxu0 0
    %477 = vmatprep.subr.bf16.mxu0 0
    %478 = vmatpush1.bf16.msra.mxu0 0
    %479 = vmatprep.subr.bf16.mxu0 0
    %480 = vmatpush1.bf16.msra.mxu0 0
    %481 = vmatprep.subr.bf16.mxu0 0
    %482 = vmatpush1.bf16.msra.mxu0 0
    %483 = vmatprep.subr.bf16.mxu0 0
    %484 = vmatpush1.bf16.msra.mxu0 0
    %485 = vmatprep.subr.bf16.mxu0 0
    %486 = vmatpush1.bf16.msra.mxu0 %v154
    %487 = vmatprep.subr.bf16.mxu0 0
    %488 = vmatpush2.bf16.msra.mxu0 0
    %489 = vmatprep.subr.bf16.mxu0 0
    %490 = vmatpush2.bf16.msra.mxu0 0
    %491 = vmatprep.subr.bf16.mxu0 0
    %492 = vmatpush2.bf16.msra.mxu0 0
    %493 = vmatprep.subr.bf16.mxu0 0
    %494 = vmatpush2.bf16.msra.mxu0 0
    %495 = vmatprep.subr.bf16.mxu0 0
    %496 = vmatpush2.bf16.msra.mxu0 0
    %497 = vmatprep.subr.bf16.mxu0 0
    %498 = vmatpush2.bf16.msra.mxu0 0
    %499 = vmatprep.subr.bf16.mxu0 0
    %500 = vmatpush2.bf16.msra.mxu0 0
    %501 = vmatprep.subr.bf16.mxu0 0
    %502 = vmatpush2.bf16.msra.mxu0 0
    %503 = vmatprep.mubr.bf16.mxu0 0
    %504 = vmatmul.mubr.bf16.gmra.mxu0 %v469
    %v505 = vpop.f32.mrf.mxu0
    %v506 = vadd.f32 %v146, %v505
    %v507 = vpop.f32.mrf.mxu0
    %v508 = vpop.f32.mrf.mxu0
    %v509 = vpop.f32.mrf.mxu0
    %510 = vdwg.mxu0
    %v511 = vld [vmem:[#allocation7] sm:$0x3]
    %v512 = vld [vmem:[%s2] sm:$0x3]
    %s513 = scalar_lea.vmem [#allocation7], 2
    %v514 = vld [vmem:[%s513] sm:$0x3]
    %s515 = scalar_lea.vmem %s2, 2
    %v516 = vld [vmem:[%s515] sm:$0x3]
    %v517 = vpack.c.bf16 %v511, %v511
    %v522 = vunpack.c.l.b16 %v127
    %v523 = vunpack.c.l.b16 %v128
    %v524 = vunpack.c.l.b16 %v129
    %v525 = vunpack.c.l.b16 %v130
    %v526 = vpack.c.b16 %v523, %v522
    %v527 = vpack.c.b16 %v525, %v524
    %vm530 = vcmask 261120
    %v532 = vsel %vm530, %v517, 0
    %534 = vmatprep.subr.bf16.mxu0 0
    %535 = vmatpush1.bf16.msra.mxu0 0
    %536 = vmatprep.subr.bf16.mxu0 0
    %537 = vmatpush1.bf16.msra.mxu0 0
    %538 = vmatprep.subr.bf16.mxu0 0
    %539 = vmatpush1.bf16.msra.mxu0 0
    %540 = vmatprep.subr.bf16.mxu0 0
    %541 = vmatpush1.bf16.msra.mxu0 0
    %542 = vmatprep.subr.bf16.mxu0 0
    %543 = vmatpush1.bf16.msra.mxu0 0
    %544 = vmatprep.subr.bf16.mxu0 0
    %545 = vmatpush1.bf16.msra.mxu0 0
    %546 = vmatprep.subr.bf16.mxu0 0
    %547 = vmatpush1.bf16.msra.mxu0 %v527
    %548 = vmatprep.subr.bf16.mxu0 0
    %549 = vmatpush1.bf16.msra.mxu0 %v526
    %550 = vmatprep.subr.bf16.mxu0 0
    %551 = vmatpush2.bf16.msra.mxu0 0
    %552 = vmatprep.subr.bf16.mxu0 0
    %553 = vmatpush2.bf16.msra.mxu0 0
    %554 = vmatprep.subr.bf16.mxu0 0
    %555 = vmatpush2.bf16.msra.mxu0 0
    %556 = vmatprep.subr.bf16.mxu0 0
    %557 = vmatpush2.bf16.msra.mxu0 0
    %558 = vmatprep.subr.bf16.mxu0 0
    %559 = vmatpush2.bf16.msra.mxu0 0
    %560 = vmatprep.subr.bf16.mxu0 0
    %561 = vmatpush2.bf16.msra.mxu0 0
    %562 = vmatprep.subr.bf16.mxu0 0
    %563 = vmatpush2.bf16.msra.mxu0 0
    %564 = vmatprep.subr.bf16.mxu0 0
    %565 = vmatpush2.bf16.msra.mxu0 0
    %566 = vmatprep.mubr.bf16.mxu0 0
    %567 = vmatmul.mubr.bf16.gmra.mxu0 %v532
    %v568 = vpop.f32.mrf.mxu0
    %v569 = vadd.f32 0.0, %v568
    %v570 = vpop.f32.mrf.mxu0
    %v571 = vpop.f32.mrf.mxu0
    %v572 = vpop.f32.mrf.mxu0
    %573 = vdwg.mxu0
    %v574 = vadd.f32 %v191, %v569
    %v575 = vxor.u32 %v574, 2147483648
    %v576 = vmul.f32 %v575, 1.442695
    %v577 = vpow.pop %v576
    %v578 = vadd.f32 %v577, 1.0
    %v579 = vrcp.pop %v578
    %v580 = vmul.f32 1.0, %v579
    %v581 = vtanh.pop %v574
    %583 = vrot.lane.b32.xlu0 %v512, 32
    %v584 = vpop.permute.xlu0 %583
    %v586 = vmul.f32 %v580, %v584
    %588 = vrot.lane.b32.xlu0 %v581, 64
    %v589 = vpop.permute.xlu0 %588
    %v591 = vmul.f32 %v580, %v589
    %593 = vrot.lane.b32.xlu0 %v591, 32
    %v594 = vpop.permute.xlu0 %593
    %v596 = vadd.f32 %v586, %v594
    %v597 = vtanh.pop %v596
    %599 = vrot.lane.b32.xlu0 %v597, 64
    %v600 = vpop.permute.xlu0 %599
    %v602 = vmul.f32 %v580, %v600
    %v603 = vpack.c.bf16 %v602, %v602
    %v604 = vpack.c.bf16 %v514, %v514
    %v609 = vunpack.c.l.b16 %v136
    %v610 = vunpack.c.l.b16 %v137
    %v611 = vunpack.c.l.b16 %v138
    %v612 = vunpack.c.l.b16 %v139
    %v613 = vpack.c.b16 %v610, %v609
    %v614 = vpack.c.b16 %v612, %v611
    %v618 = vsel %vm530, %v604, 0
    %620 = vmatprep.subr.bf16.mxu0 0
    %621 = vmatpush1.bf16.msra.mxu0 0
    %622 = vmatprep.subr.bf16.mxu0 0
    %623 = vmatpush1.bf16.msra.mxu0 0
    %624 = vmatprep.subr.bf16.mxu0 0
    %625 = vmatpush1.bf16.msra.mxu0 0
    %626 = vmatprep.subr.bf16.mxu0 0
    %627 = vmatpush1.bf16.msra.mxu0 0
    %628 = vmatprep.subr.bf16.mxu0 0
    %629 = vmatpush1.bf16.msra.mxu0 0
    %630 = vmatprep.subr.bf16.mxu0 0
    %631 = vmatpush1.bf16.msra.mxu0 0
    %632 = vmatprep.subr.bf16.mxu0 0
    %633 = vmatpush1.bf16.msra.mxu0 %v614
    %634 = vmatprep.subr.bf16.mxu0 0
    %635 = vmatpush1.bf16.msra.mxu0 %v613
    %636 = vmatprep.subr.bf16.mxu0 0
    %637 = vmatpush2.bf16.msra.mxu0 0
    %638 = vmatprep.subr.bf16.mxu0 0
    %639 = vmatpush2.bf16.msra.mxu0 0
    %640 = vmatprep.subr.bf16.mxu0 0
    %641 = vmatpush2.bf16.msra.mxu0 0
    %642 = vmatprep.subr.bf16.mxu0 0
    %643 = vmatpush2.bf16.msra.mxu0 0
    %644 = vmatprep.subr.bf16.mxu0 0
    %645 = vmatpush2.bf16.msra.mxu0 0
    %646 = vmatprep.subr.bf16.mxu0 0
    %647 = vmatpush2.bf16.msra.mxu0 0
    %648 = vmatprep.subr.bf16.mxu0 0
    %649 = vmatpush2.bf16.msra.mxu0 0
    %650 = vmatprep.subr.bf16.mxu0 0
    %651 = vmatpush2.bf16.msra.mxu0 0
    %652 = vmatprep.mubr.bf16.mxu0 0
    %653 = vmatmul.mubr.bf16.gmra.mxu0 %v618
    %v654 = vpop.f32.mrf.mxu0
    %v655 = vadd.f32 0.0, %v654
    %v656 = vpop.f32.mrf.mxu0
    %v657 = vpop.f32.mrf.mxu0
    %v658 = vpop.f32.mrf.mxu0
    %659 = vdwg.mxu0
    %661 = vrot.lane.b32.xlu0 %v603, 32
    %v662 = vpop.permute.xlu0 %661
    %v667 = vunpack.c.l.b16 %v132
    %v668 = vunpack.c.l.b16 %v133
    %v669 = vunpack.c.l.b16 %v134
    %v670 = vunpack.c.l.b16 %v135
    %v671 = vpack.c.b16 %v668, %v667
    %v672 = vpack.c.b16 %v670, %v669
    %v676 = vsel %vm530, %v662, 0
    %678 = vmatprep.subr.bf16.mxu0 0
    %679 = vmatpush1.bf16.msra.mxu0 0
    %680 = vmatprep.subr.bf16.mxu0 0
    %681 = vmatpush1.bf16.msra.mxu0 0
    %682 = vmatprep.subr.bf16.mxu0 0
    %683 = vmatpush1.bf16.msra.mxu0 0
    %684 = vmatprep.subr.bf16.mxu0 0
    %685 = vmatpush1.bf16.msra.mxu0 0
    %686 = vmatprep.subr.bf16.mxu0 0
    %687 = vmatpush1.bf16.msra.mxu0 0
    %688 = vmatprep.subr.bf16.mxu0 0
    %689 = vmatpush1.bf16.msra.mxu0 0
    %690 = vmatprep.subr.bf16.mxu0 0
    %691 = vmatpush1.bf16.msra.mxu0 %v672
    %692 = vmatprep.subr.bf16.mxu0 0
    %693 = vmatpush1.bf16.msra.mxu0 %v671
    %694 = vmatprep.subr.bf16.mxu0 0
    %695 = vmatpush2.bf16.msra.mxu0 0
    %696 = vmatprep.subr.bf16.mxu0 0
    %697 = vmatpush2.bf16.msra.mxu0 0
    %698 = vmatprep.subr.bf16.mxu0 0
    %699 = vmatpush2.bf16.msra.mxu0 0
    %700 = vmatprep.subr.bf16.mxu0 0
    %701 = vmatpush2.bf16.msra.mxu0 0
    %702 = vmatprep.subr.bf16.mxu0 0
    %703 = vmatpush2.bf16.msra.mxu0 0
    %704 = vmatprep.subr.bf16.mxu0 0
    %705 = vmatpush2.bf16.msra.mxu0 0
    %706 = vmatprep.subr.bf16.mxu0 0
    %707 = vmatpush2.bf16.msra.mxu0 0
    %708 = vmatprep.subr.bf16.mxu0 0
    %709 = vmatpush2.bf16.msra.mxu0 0
    %710 = vmatprep.mubr.bf16.mxu0 0
    %711 = vmatmul.mubr.bf16.gmra.mxu0 %v676
    %v712 = vpop.f32.mrf.mxu0
    %v713 = vadd.f32 %v655, %v712
    %v714 = vpop.f32.mrf.mxu0
    %v715 = vpop.f32.mrf.mxu0
    %v716 = vpop.f32.mrf.mxu0
    %717 = vdwg.mxu0
    %v719 = vlaneseq
    %v720 = vshrl.u32 %v719, 7
    %v721 = vsub.s32 0, %v720
    %v722 = vrot.slane %v140, %v721
    %v724 = vadd.f32 %v713, %v722
    %v725 = vxor.u32 %v724, 2147483648
    %v726 = vmul.f32 %v725, 1.442695
    %v727 = vpow.pop %v726
    %v728 = vadd.f32 %v727, 1.0
    %v729 = vrcp.pop %v728
    %v730 = vmul.f32 1.0, %v729
    %v731 = vtanh.pop %v724
    %733 = vrot.lane.b32.xlu0 %v516, 32
    %v734 = vpop.permute.xlu0 %733
    %v736 = vmul.f32 %v730, %v734
    %738 = vrot.lane.b32.xlu0 %v731, 64
    %v739 = vpop.permute.xlu0 %738
    %v741 = vmul.f32 %v730, %v739
    %743 = vrot.lane.b32.xlu0 %v741, 32
    %v744 = vpop.permute.xlu0 %743
    %v746 = vadd.f32 %v736, %v744
    %v747 = vtanh.pop %v746
    %749 = vrot.lane.b32.xlu0 %v747, 64
    %v750 = vpop.permute.xlu0 %749
    %v752 = vmul.f32 %v730, %v750
    %754 = vrot.lane.b32.xlu0 %v752, 32
    %v755 = vpop.permute.xlu0 %754
    %vm757 = vcmask 254976
    %758 = vst.msk [vmem:[#allocation2] sm:$0x3] %vm757, %v755
    %759 = vmatprep.subr.bf16.mxu0 0
    %760 = vmatpush1.bf16.msra.mxu0 0
    %761 = vmatprep.subr.bf16.mxu0 0
    %762 = vmatpush1.bf16.msra.mxu0 0
    %763 = vmatprep.subr.bf16.mxu0 0
    %764 = vmatpush1.bf16.msra.mxu0 0
    %765 = vmatprep.subr.bf16.mxu0 0
    %766 = vmatpush1.bf16.msra.mxu0 0
    %767 = vmatprep.subr.bf16.mxu0 0
    %768 = vmatpush1.bf16.msra.mxu0 0
    %769 = vmatprep.subr.bf16.mxu0 0
    %770 = vmatpush1.bf16.msra.mxu0 0
    %771 = vmatprep.subr.bf16.mxu0 0
    %772 = vmatpush1.bf16.msra.mxu0 %v527
    %773 = vmatprep.subr.bf16.mxu0 0
    %774 = vmatpush1.bf16.msra.mxu0 %v526
    %775 = vmatprep.subr.bf16.mxu0 0
    %776 = vmatpush2.bf16.msra.mxu0 0
    %777 = vmatprep.subr.bf16.mxu0 0
    %778 = vmatpush2.bf16.msra.mxu0 0
    %779 = vmatprep.subr.bf16.mxu0 0
    %780 = vmatpush2.bf16.msra.mxu0 0
    %781 = vmatprep.subr.bf16.mxu0 0
    %782 = vmatpush2.bf16.msra.mxu0 0
    %783 = vmatprep.subr.bf16.mxu0 0
    %784 = vmatpush2.bf16.msra.mxu0 0
    %785 = vmatprep.subr.bf16.mxu0 0
    %786 = vmatpush2.bf16.msra.mxu0 0
    %787 = vmatprep.subr.bf16.mxu0 0
    %788 = vmatpush2.bf16.msra.mxu0 0
    %789 = vmatprep.subr.bf16.mxu0 0
    %790 = vmatpush2.bf16.msra.mxu0 0
    %791 = vmatprep.mubr.bf16.mxu0 0
    %792 = vmatmul.mubr.bf16.gmra.mxu0 %v676
    %v793 = vpop.f32.mrf.mxu0
    %v794 = vadd.f32 0.0, %v793
    %v795 = vpop.f32.mrf.mxu0
    %v796 = vpop.f32.mrf.mxu0
    %v797 = vpop.f32.mrf.mxu0
    %798 = vdwg.mxu0
    %v799 = vadd.f32 %v236, %v794
    %v800 = vxor.u32 %v799, 2147483648
    %v801 = vmul.f32 %v800, 1.442695
    %v802 = vpow.pop %v801
    %v803 = vadd.f32 %v802, 1.0
    %v804 = vrcp.pop %v803
    %v805 = vmul.f32 1.0, %v804
    %v806 = vtanh.pop %v799
    %v807 = vmul.f32 %v805, %v596
    %809 = vrot.lane.b32.xlu0 %v806, 64
    %v810 = vpop.permute.xlu0 %809
    %v812 = vmul.f32 %v805, %v810
    %814 = vrot.lane.b32.xlu0 %v812, 32
    %v815 = vpop.permute.xlu0 %814
    %v817 = vadd.f32 %v807, %v815
    %v818 = vtanh.pop %v817
    %820 = vrot.lane.b32.xlu0 %v818, 64
    %v821 = vpop.permute.xlu0 %820
    %v823 = vmul.f32 %v805, %v821
    %v824 = vpack.c.bf16 %v823, %v823
    %v825 = vpack.c.bf16 %v752, %v752
    %827 = vrot.lane.b32.xlu0 %v825, 32
    %v828 = vpop.permute.xlu0 %827
    %v830 = vsel %vm530, %v828, 0
    %832 = vmatprep.subr.bf16.mxu0 0
    %833 = vmatpush1.bf16.msra.mxu0 0
    %834 = vmatprep.subr.bf16.mxu0 0
    %835 = vmatpush1.bf16.msra.mxu0 0
    %836 = vmatprep.subr.bf16.mxu0 0
    %837 = vmatpush1.bf16.msra.mxu0 0
    %838 = vmatprep.subr.bf16.mxu0 0
    %839 = vmatpush1.bf16.msra.mxu0 0
    %840 = vmatprep.subr.bf16.mxu0 0
    %841 = vmatpush1.bf16.msra.mxu0 0
    %842 = vmatprep.subr.bf16.mxu0 0
    %843 = vmatpush1.bf16.msra.mxu0 0
    %844 = vmatprep.subr.bf16.mxu0 0
    %845 = vmatpush1.bf16.msra.mxu0 %v614
    %846 = vmatprep.subr.bf16.mxu0 0
    %847 = vmatpush1.bf16.msra.mxu0 %v613
    %848 = vmatprep.subr.bf16.mxu0 0
    %849 = vmatpush2.bf16.msra.mxu0 0
    %850 = vmatprep.subr.bf16.mxu0 0
    %851 = vmatpush2.bf16.msra.mxu0 0
    %852 = vmatprep.subr.bf16.mxu0 0
    %853 = vmatpush2.bf16.msra.mxu0 0
    %854 = vmatprep.subr.bf16.mxu0 0
    %855 = vmatpush2.bf16.msra.mxu0 0
    %856 = vmatprep.subr.bf16.mxu0 0
    %857 = vmatpush2.bf16.msra.mxu0 0
    %858 = vmatprep.subr.bf16.mxu0 0
    %859 = vmatpush2.bf16.msra.mxu0 0
    %860 = vmatprep.subr.bf16.mxu0 0
    %861 = vmatpush2.bf16.msra.mxu0 0
    %862 = vmatprep.subr.bf16.mxu0 0
    %863 = vmatpush2.bf16.msra.mxu0 0
    %864 = vmatprep.mubr.bf16.mxu0 0
    %865 = vmatmul.mubr.bf16.gmra.mxu0 %v830
    %v866 = vpop.f32.mrf.mxu0
    %v867 = vadd.f32 0.0, %v866
    %v868 = vpop.f32.mrf.mxu0
    %v869 = vpop.f32.mrf.mxu0
    %v870 = vpop.f32.mrf.mxu0
    %871 = vdwg.mxu0
    %873 = vrot.lane.b32.xlu0 %v824, 32
    %v874 = vpop.permute.xlu0 %873
    %v876 = vsel %vm530, %v874, 0
    %878 = vmatprep.subr.bf16.mxu0 0
    %879 = vmatpush1.bf16.msra.mxu0 0
    %880 = vmatprep.subr.bf16.mxu0 0
    %881 = vmatpush1.bf16.msra.mxu0 0
    %882 = vmatprep.subr.bf16.mxu0 0
    %883 = vmatpush1.bf16.msra.mxu0 0
    %884 = vmatprep.subr.bf16.mxu0 0
    %885 = vmatpush1.bf16.msra.mxu0 0
    %886 = vmatprep.subr.bf16.mxu0 0
    %887 = vmatpush1.bf16.msra.mxu0 0
    %888 = vmatprep.subr.bf16.mxu0 0
    %889 = vmatpush1.bf16.msra.mxu0 0
    %890 = vmatprep.subr.bf16.mxu0 0
    %891 = vmatpush1.bf16.msra.mxu0 %v672
    %892 = vmatprep.subr.bf16.mxu0 0
    %893 = vmatpush1.bf16.msra.mxu0 %v671
    %894 = vmatprep.subr.bf16.mxu0 0
    %895 = vmatpush2.bf16.msra.mxu0 0
    %896 = vmatprep.subr.bf16.mxu0 0
    %897 = vmatpush2.bf16.msra.mxu0 0
    %898 = vmatprep.subr.bf16.mxu0 0
    %899 = vmatpush2.bf16.msra.mxu0 0
    %900 = vmatprep.subr.bf16.mxu0 0
    %901 = vmatpush2.bf16.msra.mxu0 0
    %902 = vmatprep.subr.bf16.mxu0 0
    %903 = vmatpush2.bf16.msra.mxu0 0
    %904 = vmatprep.subr.bf16.mxu0 0
    %905 = vmatpush2.bf16.msra.mxu0 0
    %906 = vmatprep.subr.bf16.mxu0 0
    %907 = vmatpush2.bf16.msra.mxu0 0
    %908 = vmatprep.subr.bf16.mxu0 0
    %909 = vmatpush2.bf16.msra.mxu0 0
    %910 = vmatprep.mubr.bf16.mxu0 0
    %911 = vmatmul.mubr.bf16.gmra.mxu0 %v876
    %v912 = vpop.f32.mrf.mxu0
    %v913 = vadd.f32 %v867, %v912
    %v914 = vpop.f32.mrf.mxu0
    %v915 = vpop.f32.mrf.mxu0
    %v916 = vpop.f32.mrf.mxu0
    %917 = vdwg.mxu0
    %v918 = vadd.f32 %v913, %v722
    %v919 = vxor.u32 %v918, 2147483648
    %v920 = vmul.f32 %v919, 1.442695
    %v921 = vpow.pop %v920
    %v922 = vadd.f32 %v921, 1.0
    %v923 = vrcp.pop %v922
    %v924 = vmul.f32 1.0, %v923
    %v925 = vtanh.pop %v918
    %v926 = vmul.f32 %v924, %v746
    %928 = vrot.lane.b32.xlu0 %v925, 64
    %v929 = vpop.permute.xlu0 %928
    %v931 = vmul.f32 %v924, %v929
    %933 = vrot.lane.b32.xlu0 %v931, 32
    %v934 = vpop.permute.xlu0 %933
    %v936 = vadd.f32 %v926, %v934
    %v937 = vtanh.pop %v936
    %939 = vrot.lane.b32.xlu0 %v937, 64
    %v940 = vpop.permute.xlu0 %939
    %v942 = vmul.f32 %v924, %v940
    %944 = vrot.lane.b32.xlu0 %v942, 32
    %v945 = vpop.permute.xlu0 %944
    %s947 = scalar_lea.vmem [#allocation2], 2
    %948 = vst.msk [vmem:[%s947] sm:$0x3] %vm757, %v945
    %949 = vmatprep.subr.bf16.mxu0 0
    %950 = vmatpush1.bf16.msra.mxu0 0
    %951 = vmatprep.subr.bf16.mxu0 0
    %952 = vmatpush1.bf16.msra.mxu0 0
    %953 = vmatprep.subr.bf16.mxu0 0
    %954 = vmatpush1.bf16.msra.mxu0 0
    %955 = vmatprep.subr.bf16.mxu0 0
    %956 = vmatpush1.bf16.msra.mxu0 0
    %957 = vmatprep.subr.bf16.mxu0 0
    %958 = vmatpush1.bf16.msra.mxu0 0
    %959 = vmatprep.subr.bf16.mxu0 0
    %960 = vmatpush1.bf16.msra.mxu0 0
    %961 = vmatprep.subr.bf16.mxu0 0
    %962 = vmatpush1.bf16.msra.mxu0 %v527
    %963 = vmatprep.subr.bf16.mxu0 0
    %964 = vmatpush1.bf16.msra.mxu0 %v526
    %965 = vmatprep.subr.bf16.mxu0 0
    %966 = vmatpush2.bf16.msra.mxu0 0
    %967 = vmatprep.subr.bf16.mxu0 0
    %968 = vmatpush2.bf16.msra.mxu0 0
    %969 = vmatprep.subr.bf16.mxu0 0
    %970 = vmatpush2.bf16.msra.mxu0 0
    %971 = vmatprep.subr.bf16.mxu0 0
    %972 = vmatpush2.bf16.msra.mxu0 0
    %973 = vmatprep.subr.bf16.mxu0 0
    %974 = vmatpush2.bf16.msra.mxu0 0
    %975 = vmatprep.subr.bf16.mxu0 0
    %976 = vmatpush2.bf16.msra.mxu0 0
    %977 = vmatprep.subr.bf16.mxu0 0
    %978 = vmatpush2.bf16.msra.mxu0 0
    %979 = vmatprep.subr.bf16.mxu0 0
    %980 = vmatpush2.bf16.msra.mxu0 0
    %981 = vmatprep.mubr.bf16.mxu0 0
    %982 = vmatmul.mubr.bf16.gmra.mxu0 %v876
    %v983 = vpop.f32.mrf.mxu0
    %v984 = vadd.f32 0.0, %v983
    %v985 = vpop.f32.mrf.mxu0
    %v986 = vpop.f32.mrf.mxu0
    %v987 = vpop.f32.mrf.mxu0
    %988 = vdwg.mxu0
    %v989 = vadd.f32 %v281, %v984
    %v990 = vxor.u32 %v989, 2147483648
    %v991 = vmul.f32 %v990, 1.442695
    %v992 = vpow.pop %v991
    %v993 = vadd.f32 %v992, 1.0
    %v994 = vrcp.pop %v993
    %v995 = vmul.f32 1.0, %v994
    %v996 = vtanh.pop %v989
    %v997 = vmul.f32 %v995, %v817
    %999 = vrot.lane.b32.xlu0 %v996, 64
    %v1000 = vpop.permute.xlu0 %999
    %v1002 = vmul.f32 %v995, %v1000
    %1004 = vrot.lane.b32.xlu0 %v1002, 32
    %v1005 = vpop.permute.xlu0 %1004
    %v1007 = vadd.f32 %v997, %v1005
    %v1008 = vtanh.pop %v1007
    %1010 = vrot.lane.b32.xlu0 %v1008, 64
    %v1011 = vpop.permute.xlu0 %1010
    %v1013 = vmul.f32 %v995, %v1011
    %v1014 = vpack.c.bf16 %v1013, %v1013
    %v1015 = vpack.c.bf16 %v942, %v942
    %1017 = vrot.lane.b32.xlu0 %v1015, 32
    %v1018 = vpop.permute.xlu0 %1017
    %v1020 = vsel %vm530, %v1018, 0
    %1022 = vmatprep.subr.bf16.mxu0 0
    %1023 = vmatpush1.bf16.msra.mxu0 0
    %1024 = vmatprep.subr.bf16.mxu0 0
    %1025 = vmatpush1.bf16.msra.mxu0 0
    %1026 = vmatprep.subr.bf16.mxu0 0
    %1027 = vmatpush1.bf16.msra.mxu0 0
    %1028 = vmatprep.subr.bf16.mxu0 0
    %1029 = vmatpush1.bf16.msra.mxu0 0
    %1030 = vmatprep.subr.bf16.mxu0 0
    %1031 = vmatpush1.bf16.msra.mxu0 0
    %1032 = vmatprep.subr.bf16.mxu0 0
    %1033 = vmatpush1.bf16.msra.mxu0 0
    %1034 = vmatprep.subr.bf16.mxu0 0
    %1035 = vmatpush1.bf16.msra.mxu0 %v614
    %1036 = vmatprep.subr.bf16.mxu0 0
    %1037 = vmatpush1.bf16.msra.mxu0 %v613
    %1038 = vmatprep.subr.bf16.mxu0 0
    %1039 = vmatpush2.bf16.msra.mxu0 0
    %1040 = vmatprep.subr.bf16.mxu0 0
    %1041 = vmatpush2.bf16.msra.mxu0 0
    %1042 = vmatprep.subr.bf16.mxu0 0
    %1043 = vmatpush2.bf16.msra.mxu0 0
    %1044 = vmatprep.subr.bf16.mxu0 0
    %1045 = vmatpush2.bf16.msra.mxu0 0
    %1046 = vmatprep.subr.bf16.mxu0 0
    %1047 = vmatpush2.bf16.msra.mxu0 0
    %1048 = vmatprep.subr.bf16.mxu0 0
    %1049 = vmatpush2.bf16.msra.mxu0 0
    %1050 = vmatprep.subr.bf16.mxu0 0
    %1051 = vmatpush2.bf16.msra.mxu0 0
    %1052 = vmatprep.subr.bf16.mxu0 0
    %1053 = vmatpush2.bf16.msra.mxu0 0
    %1054 = vmatprep.mubr.bf16.mxu0 0
    %1055 = vmatmul.mubr.bf16.gmra.mxu0 %v1020
    %v1056 = vpop.f32.mrf.mxu0
    %v1057 = vadd.f32 0.0, %v1056
    %v1058 = vpop.f32.mrf.mxu0
    %v1059 = vpop.f32.mrf.mxu0
    %v1060 = vpop.f32.mrf.mxu0
    %1061 = vdwg.mxu0
    %1063 = vrot.lane.b32.xlu0 %v1014, 32
    %v1064 = vpop.permute.xlu0 %1063
    %v1066 = vsel %vm530, %v1064, 0
    %1068 = vmatprep.subr.bf16.mxu0 0
    %1069 = vmatpush1.bf16.msra.mxu0 0
    %1070 = vmatprep.subr.bf16.mxu0 0
    %1071 = vmatpush1.bf16.msra.mxu0 0
    %1072 = vmatprep.subr.bf16.mxu0 0
    %1073 = vmatpush1.bf16.msra.mxu0 0
    %1074 = vmatprep.subr.bf16.mxu0 0
    %1075 = vmatpush1.bf16.msra.mxu0 0
    %1076 = vmatprep.subr.bf16.mxu0 0
    %1077 = vmatpush1.bf16.msra.mxu0 0
    %1078 = vmatprep.subr.bf16.mxu0 0
    %1079 = vmatpush1.bf16.msra.mxu0 0
    %1080 = vmatprep.subr.bf16.mxu0 0
    %1081 = vmatpush1.bf16.msra.mxu0 %v672
    %1082 = vmatprep.subr.bf16.mxu0 0
    %1083 = vmatpush1.bf16.msra.mxu0 %v671
    %1084 = vmatprep.subr.bf16.mxu0 0
    %1085 = vmatpush2.bf16.msra.mxu0 0
    %1086 = vmatprep.subr.bf16.mxu0 0
    %1087 = vmatpush2.bf16.msra.mxu0 0
    %1088 = vmatprep.subr.bf16.mxu0 0
    %1089 = vmatpush2.bf16.msra.mxu0 0
    %1090 = vmatprep.subr.bf16.mxu0 0
    %1091 = vmatpush2.bf16.msra.mxu0 0
    %1092 = vmatprep.subr.bf16.mxu0 0
    %1093 = vmatpush2.bf16.msra.mxu0 0
    %1094 = vmatprep.subr.bf16.mxu0 0
    %1095 = vmatpush2.bf16.msra.mxu0 0
    %1096 = vmatprep.subr.bf16.mxu0 0
    %1097 = vmatpush2.bf16.msra.mxu0 0
    %1098 = vmatprep.subr.bf16.mxu0 0
    %1099 = vmatpush2.bf16.msra.mxu0 0
    %1100 = vmatprep.mubr.bf16.mxu0 0
    %1101 = vmatmul.mubr.bf16.gmra.mxu0 %v1066
    %v1102 = vpop.f32.mrf.mxu0
    %v1103 = vadd.f32 %v1057, %v1102
    %v1104 = vpop.f32.mrf.mxu0
    %v1105 = vpop.f32.mrf.mxu0
    %v1106 = vpop.f32.mrf.mxu0
    %1107 = vdwg.mxu0
    %v1108 = vadd.f32 %v1103, %v722
    %v1109 = vxor.u32 %v1108, 2147483648
    %v1110 = vmul.f32 %v1109, 1.442695
    %v1111 = vpow.pop %v1110
    %v1112 = vadd.f32 %v1111, 1.0
    %v1113 = vrcp.pop %v1112
    %v1114 = vmul.f32 1.0, %v1113
    %v1115 = vtanh.pop %v1108
    %v1116 = vmul.f32 %v1114, %v936
    %1118 = vrot.lane.b32.xlu0 %v1115, 64
    %v1119 = vpop.permute.xlu0 %1118
    %v1121 = vmul.f32 %v1114, %v1119
    %1123 = vrot.lane.b32.xlu0 %v1121, 32
    %v1124 = vpop.permute.xlu0 %1123
    %v1126 = vadd.f32 %v1116, %v1124
    %v1127 = vtanh.pop %v1126
    %1129 = vrot.lane.b32.xlu0 %v1127, 64
    %v1130 = vpop.permute.xlu0 %1129
    %v1132 = vmul.f32 %v1114, %v1130
    %1134 = vrot.lane.b32.xlu0 %v1132, 32
    %v1135 = vpop.permute.xlu0 %1134
    %s1137 = scalar_lea.vmem [#allocation2], 4
    %1138 = vst.msk [vmem:[%s1137] sm:$0x3] %vm757, %v1135
    %1139 = vmatprep.subr.bf16.mxu0 0
    %1140 = vmatpush1.bf16.msra.mxu0 0
    %1141 = vmatprep.subr.bf16.mxu0 0
    %1142 = vmatpush1.bf16.msra.mxu0 0
    %1143 = vmatprep.subr.bf16.mxu0 0
    %1144 = vmatpush1.bf16.msra.mxu0 0
    %1145 = vmatprep.subr.bf16.mxu0 0
    %1146 = vmatpush1.bf16.msra.mxu0 0
    %1147 = vmatprep.subr.bf16.mxu0 0
    %1148 = vmatpush1.bf16.msra.mxu0 0
    %1149 = vmatprep.subr.bf16.mxu0 0
    %1150 = vmatpush1.bf16.msra.mxu0 0
    %1151 = vmatprep.subr.bf16.mxu0 0
    %1152 = vmatpush1.bf16.msra.mxu0 %v527
    %1153 = vmatprep.subr.bf16.mxu0 0
    %1154 = vmatpush1.bf16.msra.mxu0 %v526
    %1155 = vmatprep.subr.bf16.mxu0 0
    %1156 = vmatpush2.bf16.msra.mxu0 0
    %1157 = vmatprep.subr.bf16.mxu0 0
    %1158 = vmatpush2.bf16.msra.mxu0 0
    %1159 = vmatprep.subr.bf16.mxu0 0
    %1160 = vmatpush2.bf16.msra.mxu0 0
    %1161 = vmatprep.subr.bf16.mxu0 0
    %1162 = vmatpush2.bf16.msra.mxu0 0
    %1163 = vmatprep.subr.bf16.mxu0 0
    %1164 = vmatpush2.bf16.msra.mxu0 0
    %1165 = vmatprep.subr.bf16.mxu0 0
    %1166 = vmatpush2.bf16.msra.mxu0 0
    %1167 = vmatprep.subr.bf16.mxu0 0
    %1168 = vmatpush2.bf16.msra.mxu0 0
    %1169 = vmatprep.subr.bf16.mxu0 0
    %1170 = vmatpush2.bf16.msra.mxu0 0
    %1171 = vmatprep.mubr.bf16.mxu0 0
    %1172 = vmatmul.mubr.bf16.gmra.mxu0 %v1066
    %v1173 = vpop.f32.mrf.mxu0
    %v1174 = vadd.f32 0.0, %v1173
    %v1175 = vpop.f32.mrf.mxu0
    %v1176 = vpop.f32.mrf.mxu0
    %v1177 = vpop.f32.mrf.mxu0
    %1178 = vdwg.mxu0
    %v1179 = vadd.f32 %v326, %v1174
    %v1180 = vxor.u32 %v1179, 2147483648
    %v1181 = vmul.f32 %v1180, 1.442695
    %v1182 = vpow.pop %v1181
    %v1183 = vadd.f32 %v1182, 1.0
    %v1184 = vrcp.pop %v1183
    %v1185 = vmul.f32 1.0, %v1184
    %v1186 = vtanh.pop %v1179
    %v1187 = vmul.f32 %v1185, %v1007
    %1189 = vrot.lane.b32.xlu0 %v1186, 64
    %v1190 = vpop.permute.xlu0 %1189
    %v1192 = vmul.f32 %v1185, %v1190
    %1194 = vrot.lane.b32.xlu0 %v1192, 32
    %v1195 = vpop.permute.xlu0 %1194
    %v1197 = vadd.f32 %v1187, %v1195
    %v1198 = vtanh.pop %v1197
    %1200 = vrot.lane.b32.xlu0 %v1198, 64
    %v1201 = vpop.permute.xlu0 %1200
    %v1203 = vmul.f32 %v1185, %v1201
    %v1204 = vpack.c.bf16 %v1203, %v1203
    %v1205 = vpack.c.bf16 %v1132, %v1132
    %1207 = vrot.lane.b32.xlu0 %v1205, 32
    %v1208 = vpop.permute.xlu0 %1207
    %v1210 = vsel %vm530, %v1208, 0
    %1212 = vmatprep.subr.bf16.mxu0 0
    %1213 = vmatpush1.bf16.msra.mxu0 0
    %1214 = vmatprep.subr.bf16.mxu0 0
    %1215 = vmatpush1.bf16.msra.mxu0 0
    %1216 = vmatprep.subr.bf16.mxu0 0
    %1217 = vmatpush1.bf16.msra.mxu0 0
    %1218 = vmatprep.subr.bf16.mxu0 0
    %1219 = vmatpush1.bf16.msra.mxu0 0
    %1220 = vmatprep.subr.bf16.mxu0 0
    %1221 = vmatpush1.bf16.msra.mxu0 0
    %1222 = vmatprep.subr.bf16.mxu0 0
    %1223 = vmatpush1.bf16.msra.mxu0 0
    %1224 = vmatprep.subr.bf16.mxu0 0
    %1225 = vmatpush1.bf16.msra.mxu0 %v614
    %1226 = vmatprep.subr.bf16.mxu0 0
    %1227 = vmatpush1.bf16.msra.mxu0 %v613
    %1228 = vmatprep.subr.bf16.mxu0 0
    %1229 = vmatpush2.bf16.msra.mxu0 0
    %1230 = vmatprep.subr.bf16.mxu0 0
    %1231 = vmatpush2.bf16.msra.mxu0 0
    %1232 = vmatprep.subr.bf16.mxu0 0
    %1233 = vmatpush2.bf16.msra.mxu0 0
    %1234 = vmatprep.subr.bf16.mxu0 0
    %1235 = vmatpush2.bf16.msra.mxu0 0
    %1236 = vmatprep.subr.bf16.mxu0 0
    %1237 = vmatpush2.bf16.msra.mxu0 0
    %1238 = vmatprep.subr.bf16.mxu0 0
    %1239 = vmatpush2.bf16.msra.mxu0 0
    %1240 = vmatprep.subr.bf16.mxu0 0
    %1241 = vmatpush2.bf16.msra.mxu0 0
    %1242 = vmatprep.subr.bf16.mxu0 0
    %1243 = vmatpush2.bf16.msra.mxu0 0
    %1244 = vmatprep.mubr.bf16.mxu0 0
    %1245 = vmatmul.mubr.bf16.gmra.mxu0 %v1210
    %v1246 = vpop.f32.mrf.mxu0
    %v1247 = vadd.f32 0.0, %v1246
    %v1248 = vpop.f32.mrf.mxu0
    %v1249 = vpop.f32.mrf.mxu0
    %v1250 = vpop.f32.mrf.mxu0
    %1251 = vdwg.mxu0
    %1253 = vrot.lane.b32.xlu0 %v1204, 32
    %v1254 = vpop.permute.xlu0 %1253
    %v1256 = vsel %vm530, %v1254, 0
    %1258 = vmatprep.subr.bf16.mxu0 0
    %1259 = vmatpush1.bf16.msra.mxu0 0
    %1260 = vmatprep.subr.bf16.mxu0 0
    %1261 = vmatpush1.bf16.msra.mxu0 0
    %1262 = vmatprep.subr.bf16.mxu0 0
    %1263 = vmatpush1.bf16.msra.mxu0 0
    %1264 = vmatprep.subr.bf16.mxu0 0
    %1265 = vmatpush1.bf16.msra.mxu0 0
    %1266 = vmatprep.subr.bf16.mxu0 0
    %1267 = vmatpush1.bf16.msra.mxu0 0
    %1268 = vmatprep.subr.bf16.mxu0 0
    %1269 = vmatpush1.bf16.msra.mxu0 0
    %1270 = vmatprep.subr.bf16.mxu0 0
    %1271 = vmatpush1.bf16.msra.mxu0 %v672
    %1272 = vmatprep.subr.bf16.mxu0 0
    %1273 = vmatpush1.bf16.msra.mxu0 %v671
    %1274 = vmatprep.subr.bf16.mxu0 0
    %1275 = vmatpush2.bf16.msra.mxu0 0
    %1276 = vmatprep.subr.bf16.mxu0 0
    %1277 = vmatpush2.bf16.msra.mxu0 0
    %1278 = vmatprep.subr.bf16.mxu0 0
    %1279 = vmatpush2.bf16.msra.mxu0 0
    %1280 = vmatprep.subr.bf16.mxu0 0
    %1281 = vmatpush2.bf16.msra.mxu0 0
    %1282 = vmatprep.subr.bf16.mxu0 0
    %1283 = vmatpush2.bf16.msra.mxu0 0
    %1284 = vmatprep.subr.bf16.mxu0 0
    %1285 = vmatpush2.bf16.msra.mxu0 0
    %1286 = vmatprep.subr.bf16.mxu0 0
    %1287 = vmatpush2.bf16.msra.mxu0 0
    %1288 = vmatprep.subr.bf16.mxu0 0
    %1289 = vmatpush2.bf16.msra.mxu0 0
    %1290 = vmatprep.mubr.bf16.mxu0 0
    %1291 = vmatmul.mubr.bf16.gmra.mxu0 %v1256
    %v1292 = vpop.f32.mrf.mxu0
    %v1293 = vadd.f32 %v1247, %v1292
    %v1294 = vpop.f32.mrf.mxu0
    %v1295 = vpop.f32.mrf.mxu0
    %v1296 = vpop.f32.mrf.mxu0
    %1297 = vdwg.mxu0
    %v1298 = vadd.f32 %v1293, %v722
    %v1299 = vxor.u32 %v1298, 2147483648
    %v1300 = vmul.f32 %v1299, 1.442695
    %v1301 = vpow.pop %v1300
    %v1302 = vadd.f32 %v1301, 1.0
    %v1303 = vrcp.pop %v1302
    %v1304 = vmul.f32 1.0, %v1303
    %v1305 = vtanh.pop %v1298
    %v1306 = vmul.f32 %v1304, %v1126
    %1308 = vrot.lane.b32.xlu0 %v1305, 64
    %v1309 = vpop.permute.xlu0 %1308
    %v1311 = vmul.f32 %v1304, %v1309
    %1313 = vrot.lane.b32.xlu0 %v1311, 32
    %v1314 = vpop.permute.xlu0 %1313
    %v1316 = vadd.f32 %v1306, %v1314
    %v1317 = vtanh.pop %v1316
    %1319 = vrot.lane.b32.xlu0 %v1317, 64
    %v1320 = vpop.permute.xlu0 %1319
    %v1322 = vmul.f32 %v1304, %v1320
    %1324 = vrot.lane.b32.xlu0 %v1322, 32
    %v1325 = vpop.permute.xlu0 %1324
    %s1327 = scalar_lea.vmem [#allocation2], 6
    %1328 = vst.msk [vmem:[%s1327] sm:$0x3] %vm757, %v1325
    %1329 = vmatprep.subr.bf16.mxu0 0
    %1330 = vmatpush1.bf16.msra.mxu0 0
    %1331 = vmatprep.subr.bf16.mxu0 0
    %1332 = vmatpush1.bf16.msra.mxu0 0
    %1333 = vmatprep.subr.bf16.mxu0 0
    %1334 = vmatpush1.bf16.msra.mxu0 0
    %1335 = vmatprep.subr.bf16.mxu0 0
    %1336 = vmatpush1.bf16.msra.mxu0 0
    %1337 = vmatprep.subr.bf16.mxu0 0
    %1338 = vmatpush1.bf16.msra.mxu0 0
    %1339 = vmatprep.subr.bf16.mxu0 0
    %1340 = vmatpush1.bf16.msra.mxu0 0
    %1341 = vmatprep.subr.bf16.mxu0 0
    %1342 = vmatpush1.bf16.msra.mxu0 %v527
    %1343 = vmatprep.subr.bf16.mxu0 0
    %1344 = vmatpush1.bf16.msra.mxu0 %v526
    %1345 = vmatprep.subr.bf16.mxu0 0
    %1346 = vmatpush2.bf16.msra.mxu0 0
    %1347 = vmatprep.subr.bf16.mxu0 0
    %1348 = vmatpush2.bf16.msra.mxu0 0
    %1349 = vmatprep.subr.bf16.mxu0 0
    %1350 = vmatpush2.bf16.msra.mxu0 0
    %1351 = vmatprep.subr.bf16.mxu0 0
    %1352 = vmatpush2.bf16.msra.mxu0 0
    %1353 = vmatprep.subr.bf16.mxu0 0
    %1354 = vmatpush2.bf16.msra.mxu0 0
    %1355 = vmatprep.subr.bf16.mxu0 0
    %1356 = vmatpush2.bf16.msra.mxu0 0
    %1357 = vmatprep.subr.bf16.mxu0 0
    %1358 = vmatpush2.bf16.msra.mxu0 0
    %1359 = vmatprep.subr.bf16.mxu0 0
    %1360 = vmatpush2.bf16.msra.mxu0 0
    %1361 = vmatprep.mubr.bf16.mxu0 0
    %1362 = vmatmul.mubr.bf16.gmra.mxu0 %v1256
    %v1363 = vpop.f32.mrf.mxu0
    %v1364 = vadd.f32 0.0, %v1363
    %v1365 = vpop.f32.mrf.mxu0
    %v1366 = vpop.f32.mrf.mxu0
    %v1367 = vpop.f32.mrf.mxu0
    %1368 = vdwg.mxu0
    %v1369 = vadd.f32 %v371, %v1364
    %v1370 = vxor.u32 %v1369, 2147483648
    %v1371 = vmul.f32 %v1370, 1.442695
    %v1372 = vpow.pop %v1371
    %v1373 = vadd.f32 %v1372, 1.0
    %v1374 = vrcp.pop %v1373
    %v1375 = vmul.f32 1.0, %v1374
    %v1376 = vtanh.pop %v1369
    %v1377 = vmul.f32 %v1375, %v1197
    %1379 = vrot.lane.b32.xlu0 %v1376, 64
    %v1380 = vpop.permute.xlu0 %1379
    %v1382 = vmul.f32 %v1375, %v1380
    %1384 = vrot.lane.b32.xlu0 %v1382, 32
    %v1385 = vpop.permute.xlu0 %1384
    %v1387 = vadd.f32 %v1377, %v1385
    %v1388 = vtanh.pop %v1387
    %1390 = vrot.lane.b32.xlu0 %v1388, 64
    %v1391 = vpop.permute.xlu0 %1390
    %v1393 = vmul.f32 %v1375, %v1391
    %v1394 = vpack.c.bf16 %v1393, %v1393
    %v1395 = vpack.c.bf16 %v1322, %v1322
    %1397 = vrot.lane.b32.xlu0 %v1395, 32
    %v1398 = vpop.permute.xlu0 %1397
    %v1400 = vsel %vm530, %v1398, 0
    %1402 = vmatprep.subr.bf16.mxu0 0
    %1403 = vmatpush1.bf16.msra.mxu0 0
    %1404 = vmatprep.subr.bf16.mxu0 0
    %1405 = vmatpush1.bf16.msra.mxu0 0
    %1406 = vmatprep.subr.bf16.mxu0 0
    %1407 = vmatpush1.bf16.msra.mxu0 0
    %1408 = vmatprep.subr.bf16.mxu0 0
    %1409 = vmatpush1.bf16.msra.mxu0 0
    %1410 = vmatprep.subr.bf16.mxu0 0
    %1411 = vmatpush1.bf16.msra.mxu0 0
    %1412 = vmatprep.subr.bf16.mxu0 0
    %1413 = vmatpush1.bf16.msra.mxu0 0
    %1414 = vmatprep.subr.bf16.mxu0 0
    %1415 = vmatpush1.bf16.msra.mxu0 %v614
    %1416 = vmatprep.subr.bf16.mxu0 0
    %1417 = vmatpush1.bf16.msra.mxu0 %v613
    %1418 = vmatprep.subr.bf16.mxu0 0
    %1419 = vmatpush2.bf16.msra.mxu0 0
    %1420 = vmatprep.subr.bf16.mxu0 0
    %1421 = vmatpush2.bf16.msra.mxu0 0
    %1422 = vmatprep.subr.bf16.mxu0 0
    %1423 = vmatpush2.bf16.msra.mxu0 0
    %1424 = vmatprep.subr.bf16.mxu0 0
    %1425 = vmatpush2.bf16.msra.mxu0 0
    %1426 = vmatprep.subr.bf16.mxu0 0
    %1427 = vmatpush2.bf16.msra.mxu0 0
    %1428 = vmatprep.subr.bf16.mxu0 0
    %1429 = vmatpush2.bf16.msra.mxu0 0
    %1430 = vmatprep.subr.bf16.mxu0 0
    %1431 = vmatpush2.bf16.msra.mxu0 0
    %1432 = vmatprep.subr.bf16.mxu0 0
    %1433 = vmatpush2.bf16.msra.mxu0 0
    %1434 = vmatprep.mubr.bf16.mxu0 0
    %1435 = vmatmul.mubr.bf16.gmra.mxu0 %v1400
    %v1436 = vpop.f32.mrf.mxu0
    %v1437 = vadd.f32 0.0, %v1436
    %v1438 = vpop.f32.mrf.mxu0
    %v1439 = vpop.f32.mrf.mxu0
    %v1440 = vpop.f32.mrf.mxu0
    %1441 = vdwg.mxu0
    %1443 = vrot.lane.b32.xlu0 %v1394, 32
    %v1444 = vpop.permute.xlu0 %1443
    %v1446 = vsel %vm530, %v1444, 0
    %1448 = vmatprep.subr.bf16.mxu0 0
    %1449 = vmatpush1.bf16.msra.mxu0 0
    %1450 = vmatprep.subr.bf16.mxu0 0
    %1451 = vmatpush1.bf16.msra.mxu0 0
    %1452 = vmatprep.subr.bf16.mxu0 0
    %1453 = vmatpush1.bf16.msra.mxu0 0
    %1454 = vmatprep.subr.bf16.mxu0 0
    %1455 = vmatpush1.bf16.msra.mxu0 0
    %1456 = vmatprep.subr.bf16.mxu0 0
    %1457 = vmatpush1.bf16.msra.mxu0 0
    %1458 = vmatprep.subr.bf16.mxu0 0
    %1459 = vmatpush1.bf16.msra.mxu0 0
    %1460 = vmatprep.subr.bf16.mxu0 0
    %1461 = vmatpush1.bf16.msra.mxu0 %v672
    %1462 = vmatprep.subr.bf16.mxu0 0
    %1463 = vmatpush1.bf16.msra.mxu0 %v671
    %1464 = vmatprep.subr.bf16.mxu0 0
    %1465 = vmatpush2.bf16.msra.mxu0 0
    %1466 = vmatprep.subr.bf16.mxu0 0
    %1467 = vmatpush2.bf16.msra.mxu0 0
    %1468 = vmatprep.subr.bf16.mxu0 0
    %1469 = vmatpush2.bf16.msra.mxu0 0
    %1470 = vmatprep.subr.bf16.mxu0 0
    %1471 = vmatpush2.bf16.msra.mxu0 0
    %1472 = vmatprep.subr.bf16.mxu0 0
    %1473 = vmatpush2.bf16.msra.mxu0 0
    %1474 = vmatprep.subr.bf16.mxu0 0
    %1475 = vmatpush2.bf16.msra.mxu0 0
    %1476 = vmatprep.subr.bf16.mxu0 0
    %1477 = vmatpush2.bf16.msra.mxu0 0
    %1478 = vmatprep.subr.bf16.mxu0 0
    %1479 = vmatpush2.bf16.msra.mxu0 0
    %1480 = vmatprep.mubr.bf16.mxu0 0
    %1481 = vmatmul.mubr.bf16.gmra.mxu0 %v1446
    %v1482 = vpop.f32.mrf.mxu0
    %v1483 = vadd.f32 %v1437, %v1482
    %v1484 = vpop.f32.mrf.mxu0
    %v1485 = vpop.f32.mrf.mxu0
    %v1486 = vpop.f32.mrf.mxu0
    %1487 = vdwg.mxu0
    %v1488 = vadd.f32 %v1483, %v722
    %v1489 = vxor.u32 %v1488, 2147483648
    %v1490 = vmul.f32 %v1489, 1.442695
    %v1491 = vpow.pop %v1490
    %v1492 = vadd.f32 %v1491, 1.0
    %v1493 = vrcp.pop %v1492
    %v1494 = vmul.f32 1.0, %v1493
    %v1495 = vtanh.pop %v1488
    %v1496 = vmul.f32 %v1494, %v1316
    %1498 = vrot.lane.b32.xlu0 %v1495, 64
    %v1499 = vpop.permute.xlu0 %1498
    %v1501 = vmul.f32 %v1494, %v1499
    %1503 = vrot.lane.b32.xlu0 %v1501, 32
    %v1504 = vpop.permute.xlu0 %1503
    %v1506 = vadd.f32 %v1496, %v1504
    %v1507 = vtanh.pop %v1506
    %1509 = vrot.lane.b32.xlu0 %v1507, 64
    %v1510 = vpop.permute.xlu0 %1509
    %v1512 = vmul.f32 %v1494, %v1510
    %1514 = vrot.lane.b32.xlu0 %v1512, 32
    %v1515 = vpop.permute.xlu0 %1514
    %s1517 = scalar_lea.vmem [#allocation2], 8
    %1518 = vst.msk [vmem:[%s1517] sm:$0x3] %vm757, %v1515
    %1519 = vmatprep.subr.bf16.mxu0 0
    %1520 = vmatpush1.bf16.msra.mxu0 0
    %1521 = vmatprep.subr.bf16.mxu0 0
    %1522 = vmatpush1.bf16.msra.mxu0 0
    %1523 = vmatprep.subr.bf16.mxu0 0
    %1524 = vmatpush1.bf16.msra.mxu0 0
    %1525 = vmatprep.subr.bf16.mxu0 0
    %1526 = vmatpush1.bf16.msra.mxu0 0
    %1527 = vmatprep.subr.bf16.mxu0 0
    %1528 = vmatpush1.bf16.msra.mxu0 0
    %1529 = vmatprep.subr.bf16.mxu0 0
    %1530 = vmatpush1.bf16.msra.mxu0 0
    %1531 = vmatprep.subr.bf16.mxu0 0
    %1532 = vmatpush1.bf16.msra.mxu0 %v527
    %1533 = vmatprep.subr.bf16.mxu0 0
    %1534 = vmatpush1.bf16.msra.mxu0 %v526
    %1535 = vmatprep.subr.bf16.mxu0 0
    %1536 = vmatpush2.bf16.msra.mxu0 0
    %1537 = vmatprep.subr.bf16.mxu0 0
    %1538 = vmatpush2.bf16.msra.mxu0 0
    %1539 = vmatprep.subr.bf16.mxu0 0
    %1540 = vmatpush2.bf16.msra.mxu0 0
    %1541 = vmatprep.subr.bf16.mxu0 0
    %1542 = vmatpush2.bf16.msra.mxu0 0
    %1543 = vmatprep.subr.bf16.mxu0 0
    %1544 = vmatpush2.bf16.msra.mxu0 0
    %1545 = vmatprep.subr.bf16.mxu0 0
    %1546 = vmatpush2.bf16.msra.mxu0 0
    %1547 = vmatprep.subr.bf16.mxu0 0
    %1548 = vmatpush2.bf16.msra.mxu0 0
    %1549 = vmatprep.subr.bf16.mxu0 0
    %1550 = vmatpush2.bf16.msra.mxu0 0
    %1551 = vmatprep.mubr.bf16.mxu0 0
    %1552 = vmatmul.mubr.bf16.gmra.mxu0 %v1446
    %v1553 = vpop.f32.mrf.mxu0
    %v1554 = vadd.f32 0.0, %v1553
    %v1555 = vpop.f32.mrf.mxu0
    %v1556 = vpop.f32.mrf.mxu0
    %v1557 = vpop.f32.mrf.mxu0
    %1558 = vdwg.mxu0
    %v1559 = vadd.f32 %v416, %v1554
    %v1560 = vxor.u32 %v1559, 2147483648
    %v1561 = vmul.f32 %v1560, 1.442695
    %v1562 = vpow.pop %v1561
    %v1563 = vadd.f32 %v1562, 1.0
    %v1564 = vrcp.pop %v1563
    %v1565 = vmul.f32 1.0, %v1564
    %v1566 = vtanh.pop %v1559
    %v1567 = vmul.f32 %v1565, %v1387
    %1569 = vrot.lane.b32.xlu0 %v1566, 64
    %v1570 = vpop.permute.xlu0 %1569
    %v1572 = vmul.f32 %v1565, %v1570
    %1574 = vrot.lane.b32.xlu0 %v1572, 32
    %v1575 = vpop.permute.xlu0 %1574
    %v1577 = vadd.f32 %v1567, %v1575
    %v1578 = vtanh.pop %v1577
    %1580 = vrot.lane.b32.xlu0 %v1578, 64
    %v1581 = vpop.permute.xlu0 %1580
    %v1583 = vmul.f32 %v1565, %v1581
    %v1584 = vpack.c.bf16 %v1583, %v1583
    %v1585 = vpack.c.bf16 %v1512, %v1512
    %1587 = vrot.lane.b32.xlu0 %v1585, 32
    %v1588 = vpop.permute.xlu0 %1587
    %v1590 = vsel %vm530, %v1588, 0
    %1592 = vmatprep.subr.bf16.mxu0 0
    %1593 = vmatpush1.bf16.msra.mxu0 0
    %1594 = vmatprep.subr.bf16.mxu0 0
    %1595 = vmatpush1.bf16.msra.mxu0 0
    %1596 = vmatprep.subr.bf16.mxu0 0
    %1597 = vmatpush1.bf16.msra.mxu0 0
    %1598 = vmatprep.subr.bf16.mxu0 0
    %1599 = vmatpush1.bf16.msra.mxu0 0
    %1600 = vmatprep.subr.bf16.mxu0 0
    %1601 = vmatpush1.bf16.msra.mxu0 0
    %1602 = vmatprep.subr.bf16.mxu0 0
    %1603 = vmatpush1.bf16.msra.mxu0 0
    %1604 = vmatprep.subr.bf16.mxu0 0
    %1605 = vmatpush1.bf16.msra.mxu0 %v614
    %1606 = vmatprep.subr.bf16.mxu0 0
    %1607 = vmatpush1.bf16.msra.mxu0 %v613
    %1608 = vmatprep.subr.bf16.mxu0 0
    %1609 = vmatpush2.bf16.msra.mxu0 0
    %1610 = vmatprep.subr.bf16.mxu0 0
    %1611 = vmatpush2.bf16.msra.mxu0 0
    %1612 = vmatprep.subr.bf16.mxu0 0
    %1613 = vmatpush2.bf16.msra.mxu0 0
    %1614 = vmatprep.subr.bf16.mxu0 0
    %1615 = vmatpush2.bf16.msra.mxu0 0
    %1616 = vmatprep.subr.bf16.mxu0 0
    %1617 = vmatpush2.bf16.msra.mxu0 0
    %1618 = vmatprep.subr.bf16.mxu0 0
    %1619 = vmatpush2.bf16.msra.mxu0 0
    %1620 = vmatprep.subr.bf16.mxu0 0
    %1621 = vmatpush2.bf16.msra.mxu0 0
    %1622 = vmatprep.subr.bf16.mxu0 0
    %1623 = vmatpush2.bf16.msra.mxu0 0
    %1624 = vmatprep.mubr.bf16.mxu0 0
    %1625 = vmatmul.mubr.bf16.gmra.mxu0 %v1590
    %v1626 = vpop.f32.mrf.mxu0
    %v1627 = vadd.f32 0.0, %v1626
    %v1628 = vpop.f32.mrf.mxu0
    %v1629 = vpop.f32.mrf.mxu0
    %v1630 = vpop.f32.mrf.mxu0
    %1631 = vdwg.mxu0
    %1633 = vrot.lane.b32.xlu0 %v1584, 32
    %v1634 = vpop.permute.xlu0 %1633
    %v1636 = vsel %vm530, %v1634, 0
    %1638 = vmatprep.subr.bf16.mxu0 0
    %1639 = vmatpush1.bf16.msra.mxu0 0
    %1640 = vmatprep.subr.bf16.mxu0 0
    %1641 = vmatpush1.bf16.msra.mxu0 0
    %1642 = vmatprep.subr.bf16.mxu0 0
    %1643 = vmatpush1.bf16.msra.mxu0 0
    %1644 = vmatprep.subr.bf16.mxu0 0
    %1645 = vmatpush1.bf16.msra.mxu0 0
    %1646 = vmatprep.subr.bf16.mxu0 0
    %1647 = vmatpush1.bf16.msra.mxu0 0
    %1648 = vmatprep.subr.bf16.mxu0 0
    %1649 = vmatpush1.bf16.msra.mxu0 0
    %1650 = vmatprep.subr.bf16.mxu0 0
    %1651 = vmatpush1.bf16.msra.mxu0 %v672
    %1652 = vmatprep.subr.bf16.mxu0 0
    %1653 = vmatpush1.bf16.msra.mxu0 %v671
    %1654 = vmatprep.subr.bf16.mxu0 0
    %1655 = vmatpush2.bf16.msra.mxu0 0
    %1656 = vmatprep.subr.bf16.mxu0 0
    %1657 = vmatpush2.bf16.msra.mxu0 0
    %1658 = vmatprep.subr.bf16.mxu0 0
    %1659 = vmatpush2.bf16.msra.mxu0 0
    %1660 = vmatprep.subr.bf16.mxu0 0
    %1661 = vmatpush2.bf16.msra.mxu0 0
    %1662 = vmatprep.subr.bf16.mxu0 0
    %1663 = vmatpush2.bf16.msra.mxu0 0
    %1664 = vmatprep.subr.bf16.mxu0 0
    %1665 = vmatpush2.bf16.msra.mxu0 0
    %1666 = vmatprep.subr.bf16.mxu0 0
    %1667 = vmatpush2.bf16.msra.mxu0 0
    %1668 = vmatprep.subr.bf16.mxu0 0
    %1669 = vmatpush2.bf16.msra.mxu0 0
    %1670 = vmatprep.mubr.bf16.mxu0 0
    %1671 = vmatmul.mubr.bf16.gmra.mxu0 %v1636
    %v1672 = vpop.f32.mrf.mxu0
    %v1673 = vadd.f32 %v1627, %v1672
    %v1674 = vpop.f32.mrf.mxu0
    %v1675 = vpop.f32.mrf.mxu0
    %v1676 = vpop.f32.mrf.mxu0
    %1677 = vdwg.mxu0
    %v1678 = vadd.f32 %v1673, %v722
    %v1679 = vxor.u32 %v1678, 2147483648
    %v1680 = vmul.f32 %v1679, 1.442695
    %v1681 = vpow.pop %v1680
    %v1682 = vadd.f32 %v1681, 1.0
    %v1683 = vrcp.pop %v1682
    %v1684 = vmul.f32 1.0, %v1683
    %v1685 = vtanh.pop %v1678
    %v1686 = vmul.f32 %v1684, %v1506
    %1688 = vrot.lane.b32.xlu0 %v1685, 64
    %v1689 = vpop.permute.xlu0 %1688
    %v1691 = vmul.f32 %v1684, %v1689
    %1693 = vrot.lane.b32.xlu0 %v1691, 32
    %v1694 = vpop.permute.xlu0 %1693
    %v1696 = vadd.f32 %v1686, %v1694
    %v1697 = vtanh.pop %v1696
    %1699 = vrot.lane.b32.xlu0 %v1697, 64
    %v1700 = vpop.permute.xlu0 %1699
    %v1702 = vmul.f32 %v1684, %v1700
    %1704 = vrot.lane.b32.xlu0 %v1702, 32
    %v1705 = vpop.permute.xlu0 %1704
    %s1707 = scalar_lea.vmem [#allocation2], 10
    %1708 = vst.msk [vmem:[%s1707] sm:$0x3] %vm757, %v1705
    %1709 = vmatprep.subr.bf16.mxu0 0
    %1710 = vmatpush1.bf16.msra.mxu0 0
    %1711 = vmatprep.subr.bf16.mxu0 0
    %1712 = vmatpush1.bf16.msra.mxu0 0
    %1713 = vmatprep.subr.bf16.mxu0 0
    %1714 = vmatpush1.bf16.msra.mxu0 0
    %1715 = vmatprep.subr.bf16.mxu0 0
    %1716 = vmatpush1.bf16.msra.mxu0 0
    %1717 = vmatprep.subr.bf16.mxu0 0
    %1718 = vmatpush1.bf16.msra.mxu0 0
    %1719 = vmatprep.subr.bf16.mxu0 0
    %1720 = vmatpush1.bf16.msra.mxu0 0
    %1721 = vmatprep.subr.bf16.mxu0 0
    %1722 = vmatpush1.bf16.msra.mxu0 %v527
    %1723 = vmatprep.subr.bf16.mxu0 0
    %1724 = vmatpush1.bf16.msra.mxu0 %v526
    %1725 = vmatprep.subr.bf16.mxu0 0
    %1726 = vmatpush2.bf16.msra.mxu0 0
    %1727 = vmatprep.subr.bf16.mxu0 0
    %1728 = vmatpush2.bf16.msra.mxu0 0
    %1729 = vmatprep.subr.bf16.mxu0 0
    %1730 = vmatpush2.bf16.msra.mxu0 0
    %1731 = vmatprep.subr.bf16.mxu0 0
    %1732 = vmatpush2.bf16.msra.mxu0 0
    %1733 = vmatprep.subr.bf16.mxu0 0
    %1734 = vmatpush2.bf16.msra.mxu0 0
    %1735 = vmatprep.subr.bf16.mxu0 0
    %1736 = vmatpush2.bf16.msra.mxu0 0
    %1737 = vmatprep.subr.bf16.mxu0 0
    %1738 = vmatpush2.bf16.msra.mxu0 0
    %1739 = vmatprep.subr.bf16.mxu0 0
    %1740 = vmatpush2.bf16.msra.mxu0 0
    %1741 = vmatprep.mubr.bf16.mxu0 0
    %1742 = vmatmul.mubr.bf16.gmra.mxu0 %v1636
    %v1743 = vpop.f32.mrf.mxu0
    %v1744 = vadd.f32 0.0, %v1743
    %v1745 = vpop.f32.mrf.mxu0
    %v1746 = vpop.f32.mrf.mxu0
    %v1747 = vpop.f32.mrf.mxu0
    %1748 = vdwg.mxu0
    %v1749 = vadd.f32 %v461, %v1744
    %v1750 = vxor.u32 %v1749, 2147483648
    %v1751 = vmul.f32 %v1750, 1.442695
    %v1752 = vpow.pop %v1751
    %v1753 = vadd.f32 %v1752, 1.0
    %v1754 = vrcp.pop %v1753
    %v1755 = vmul.f32 1.0, %v1754
    %v1756 = vtanh.pop %v1749
    %v1757 = vmul.f32 %v1755, %v1577
    %1759 = vrot.lane.b32.xlu0 %v1756, 64
    %v1760 = vpop.permute.xlu0 %1759
    %v1762 = vmul.f32 %v1755, %v1760
    %1764 = vrot.lane.b32.xlu0 %v1762, 32
    %v1765 = vpop.permute.xlu0 %1764
    %v1767 = vadd.f32 %v1757, %v1765
    %v1768 = vtanh.pop %v1767
    %1770 = vrot.lane.b32.xlu0 %v1768, 64
    %v1771 = vpop.permute.xlu0 %1770
    %v1773 = vmul.f32 %v1755, %v1771
    %v1774 = vpack.c.bf16 %v1773, %v1773
    %v1775 = vpack.c.bf16 %v1702, %v1702
    %1777 = vrot.lane.b32.xlu0 %v1775, 32
    %v1778 = vpop.permute.xlu0 %1777
    %v1780 = vsel %vm530, %v1778, 0
    %1782 = vmatprep.subr.bf16.mxu0 0
    %1783 = vmatpush1.bf16.msra.mxu0 0
    %1784 = vmatprep.subr.bf16.mxu0 0
    %1785 = vmatpush1.bf16.msra.mxu0 0
    %1786 = vmatprep.subr.bf16.mxu0 0
    %1787 = vmatpush1.bf16.msra.mxu0 0
    %1788 = vmatprep.subr.bf16.mxu0 0
    %1789 = vmatpush1.bf16.msra.mxu0 0
    %1790 = vmatprep.subr.bf16.mxu0 0
    %1791 = vmatpush1.bf16.msra.mxu0 0
    %1792 = vmatprep.subr.bf16.mxu0 0
    %1793 = vmatpush1.bf16.msra.mxu0 0
    %1794 = vmatprep.subr.bf16.mxu0 0
    %1795 = vmatpush1.bf16.msra.mxu0 %v614
    %1796 = vmatprep.subr.bf16.mxu0 0
    %1797 = vmatpush1.bf16.msra.mxu0 %v613
    %1798 = vmatprep.subr.bf16.mxu0 0
    %1799 = vmatpush2.bf16.msra.mxu0 0
    %1800 = vmatprep.subr.bf16.mxu0 0
    %1801 = vmatpush2.bf16.msra.mxu0 0
    %1802 = vmatprep.subr.bf16.mxu0 0
    %1803 = vmatpush2.bf16.msra.mxu0 0
    %1804 = vmatprep.subr.bf16.mxu0 0
    %1805 = vmatpush2.bf16.msra.mxu0 0
    %1806 = vmatprep.subr.bf16.mxu0 0
    %1807 = vmatpush2.bf16.msra.mxu0 0
    %1808 = vmatprep.subr.bf16.mxu0 0
    %1809 = vmatpush2.bf16.msra.mxu0 0
    %1810 = vmatprep.subr.bf16.mxu0 0
    %1811 = vmatpush2.bf16.msra.mxu0 0
    %1812 = vmatprep.subr.bf16.mxu0 0
    %1813 = vmatpush2.bf16.msra.mxu0 0
    %1814 = vmatprep.mubr.bf16.mxu0 0
    %1815 = vmatmul.mubr.bf16.gmra.mxu0 %v1780
    %v1816 = vpop.f32.mrf.mxu0
    %v1817 = vadd.f32 0.0, %v1816
    %v1818 = vpop.f32.mrf.mxu0
    %v1819 = vpop.f32.mrf.mxu0
    %v1820 = vpop.f32.mrf.mxu0
    %1821 = vdwg.mxu0
    %1823 = vrot.lane.b32.xlu0 %v1774, 32
    %v1824 = vpop.permute.xlu0 %1823
    %v1826 = vsel %vm530, %v1824, 0
    %1828 = vmatprep.subr.bf16.mxu0 0
    %1829 = vmatpush1.bf16.msra.mxu0 0
    %1830 = vmatprep.subr.bf16.mxu0 0
    %1831 = vmatpush1.bf16.msra.mxu0 0
    %1832 = vmatprep.subr.bf16.mxu0 0
    %1833 = vmatpush1.bf16.msra.mxu0 0
    %1834 = vmatprep.subr.bf16.mxu0 0
    %1835 = vmatpush1.bf16.msra.mxu0 0
    %1836 = vmatprep.subr.bf16.mxu0 0
    %1837 = vmatpush1.bf16.msra.mxu0 0
    %1838 = vmatprep.subr.bf16.mxu0 0
    %1839 = vmatpush1.bf16.msra.mxu0 0
    %1840 = vmatprep.subr.bf16.mxu0 0
    %1841 = vmatpush1.bf16.msra.mxu0 %v672
    %1842 = vmatprep.subr.bf16.mxu0 0
    %1843 = vmatpush1.bf16.msra.mxu0 %v671
    %1844 = vmatprep.subr.bf16.mxu0 0
    %1845 = vmatpush2.bf16.msra.mxu0 0
    %1846 = vmatprep.subr.bf16.mxu0 0
    %1847 = vmatpush2.bf16.msra.mxu0 0
    %1848 = vmatprep.subr.bf16.mxu0 0
    %1849 = vmatpush2.bf16.msra.mxu0 0
    %1850 = vmatprep.subr.bf16.mxu0 0
    %1851 = vmatpush2.bf16.msra.mxu0 0
    %1852 = vmatprep.subr.bf16.mxu0 0
    %1853 = vmatpush2.bf16.msra.mxu0 0
    %1854 = vmatprep.subr.bf16.mxu0 0
    %1855 = vmatpush2.bf16.msra.mxu0 0
    %1856 = vmatprep.subr.bf16.mxu0 0
    %1857 = vmatpush2.bf16.msra.mxu0 0
    %1858 = vmatprep.subr.bf16.mxu0 0
    %1859 = vmatpush2.bf16.msra.mxu0 0
    %1860 = vmatprep.mubr.bf16.mxu0 0
    %1861 = vmatmul.mubr.bf16.gmra.mxu0 %v1826
    %v1862 = vpop.f32.mrf.mxu0
    %v1863 = vadd.f32 %v1817, %v1862
    %v1864 = vpop.f32.mrf.mxu0
    %v1865 = vpop.f32.mrf.mxu0
    %v1866 = vpop.f32.mrf.mxu0
    %1867 = vdwg.mxu0
    %v1868 = vadd.f32 %v1863, %v722
    %v1869 = vxor.u32 %v1868, 2147483648
    %v1870 = vmul.f32 %v1869, 1.442695
    %v1871 = vpow.pop %v1870
    %v1872 = vadd.f32 %v1871, 1.0
    %v1873 = vrcp.pop %v1872
    %v1874 = vmul.f32 1.0, %v1873
    %v1875 = vtanh.pop %v1868
    %v1876 = vmul.f32 %v1874, %v1696
    %1878 = vrot.lane.b32.xlu0 %v1875, 64
    %v1879 = vpop.permute.xlu0 %1878
    %v1881 = vmul.f32 %v1874, %v1879
    %1883 = vrot.lane.b32.xlu0 %v1881, 32
    %v1884 = vpop.permute.xlu0 %1883
    %v1886 = vadd.f32 %v1876, %v1884
    %v1887 = vtanh.pop %v1886
    %1889 = vrot.lane.b32.xlu0 %v1887, 64
    %v1890 = vpop.permute.xlu0 %1889
    %v1892 = vmul.f32 %v1874, %v1890
    %1894 = vrot.lane.b32.xlu0 %v1892, 32
    %v1895 = vpop.permute.xlu0 %1894
    %s1897 = scalar_lea.vmem [#allocation2], 12
    %1898 = vst.msk [vmem:[%s1897] sm:$0x3] %vm757, %v1895
    %1899 = vmatprep.subr.bf16.mxu0 0
    %1900 = vmatpush1.bf16.msra.mxu0 0
    %1901 = vmatprep.subr.bf16.mxu0 0
    %1902 = vmatpush1.bf16.msra.mxu0 0
    %1903 = vmatprep.subr.bf16.mxu0 0
    %1904 = vmatpush1.bf16.msra.mxu0 0
    %1905 = vmatprep.subr.bf16.mxu0 0
    %1906 = vmatpush1.bf16.msra.mxu0 0
    %1907 = vmatprep.subr.bf16.mxu0 0
    %1908 = vmatpush1.bf16.msra.mxu0 0
    %1909 = vmatprep.subr.bf16.mxu0 0
    %1910 = vmatpush1.bf16.msra.mxu0 0
    %1911 = vmatprep.subr.bf16.mxu0 0
    %1912 = vmatpush1.bf16.msra.mxu0 %v527
    %1913 = vmatprep.subr.bf16.mxu0 0
    %1914 = vmatpush1.bf16.msra.mxu0 %v526
    %1915 = vmatprep.subr.bf16.mxu0 0
    %1916 = vmatpush2.bf16.msra.mxu0 0
    %1917 = vmatprep.subr.bf16.mxu0 0
    %1918 = vmatpush2.bf16.msra.mxu0 0
    %1919 = vmatprep.subr.bf16.mxu0 0
    %1920 = vmatpush2.bf16.msra.mxu0 0
    %1921 = vmatprep.subr.bf16.mxu0 0
    %1922 = vmatpush2.bf16.msra.mxu0 0
    %1923 = vmatprep.subr.bf16.mxu0 0
    %1924 = vmatpush2.bf16.msra.mxu0 0
    %1925 = vmatprep.subr.bf16.mxu0 0
    %1926 = vmatpush2.bf16.msra.mxu0 0
    %1927 = vmatprep.subr.bf16.mxu0 0
    %1928 = vmatpush2.bf16.msra.mxu0 0
    %1929 = vmatprep.subr.bf16.mxu0 0
    %1930 = vmatpush2.bf16.msra.mxu0 0
    %1931 = vmatprep.mubr.bf16.mxu0 0
    %1932 = vmatmul.mubr.bf16.gmra.mxu0 %v1826
    %v1933 = vpop.f32.mrf.mxu0
    %v1934 = vadd.f32 0.0, %v1933
    %v1935 = vpop.f32.mrf.mxu0
    %v1936 = vpop.f32.mrf.mxu0
    %v1937 = vpop.f32.mrf.mxu0
    %1938 = vdwg.mxu0
    %v1939 = vadd.f32 %v506, %v1934
    %v1940 = vxor.u32 %v1939, 2147483648
    %v1941 = vmul.f32 %v1940, 1.442695
    %v1942 = vpow.pop %v1941
    %v1943 = vadd.f32 %v1942, 1.0
    %v1944 = vrcp.pop %v1943
    %v1945 = vmul.f32 1.0, %v1944
    %v1946 = vtanh.pop %v1939
    %v1947 = vmul.f32 %v1945, %v1767
    %1949 = vrot.lane.b32.xlu0 %v1946, 64
    %v1950 = vpop.permute.xlu0 %1949
    %v1952 = vmul.f32 %v1945, %v1950
    %1954 = vrot.lane.b32.xlu0 %v1952, 32
    %v1955 = vpop.permute.xlu0 %1954
    %v1957 = vadd.f32 %v1947, %v1955
    %v1958 = vtanh.pop %v1957
    %1960 = vrot.lane.b32.xlu0 %v1958, 64
    %v1961 = vpop.permute.xlu0 %1960
    %v1963 = vmul.f32 %v1945, %v1961
    %v1964 = vpack.c.bf16 %v1963, %v1963
    %v1965 = vpack.c.bf16 %v1892, %v1892
    %1967 = vrot.lane.b32.xlu0 %v1965, 32
    %v1968 = vpop.permute.xlu0 %1967
    %v1970 = vsel %vm530, %v1968, 0
    %1972 = vmatprep.subr.bf16.mxu0 0
    %1973 = vmatpush1.bf16.msra.mxu0 0
    %1974 = vmatprep.subr.bf16.mxu0 0
    %1975 = vmatpush1.bf16.msra.mxu0 0
    %1976 = vmatprep.subr.bf16.mxu0 0
    %1977 = vmatpush1.bf16.msra.mxu0 0
    %1978 = vmatprep.subr.bf16.mxu0 0
    %1979 = vmatpush1.bf16.msra.mxu0 0
    %1980 = vmatprep.subr.bf16.mxu0 0
    %1981 = vmatpush1.bf16.msra.mxu0 0
    %1982 = vmatprep.subr.bf16.mxu0 0
    %1983 = vmatpush1.bf16.msra.mxu0 0
    %1984 = vmatprep.subr.bf16.mxu0 0
    %1985 = vmatpush1.bf16.msra.mxu0 %v614
    %1986 = vmatprep.subr.bf16.mxu0 0
    %1987 = vmatpush1.bf16.msra.mxu0 %v613
    %1988 = vmatprep.subr.bf16.mxu0 0
    %1989 = vmatpush2.bf16.msra.mxu0 0
    %1990 = vmatprep.subr.bf16.mxu0 0
    %1991 = vmatpush2.bf16.msra.mxu0 0
    %1992 = vmatprep.subr.bf16.mxu0 0
    %1993 = vmatpush2.bf16.msra.mxu0 0
    %1994 = vmatprep.subr.bf16.mxu0 0
    %1995 = vmatpush2.bf16.msra.mxu0 0
    %1996 = vmatprep.subr.bf16.mxu0 0
    %1997 = vmatpush2.bf16.msra.mxu0 0
    %1998 = vmatprep.subr.bf16.mxu0 0
    %1999 = vmatpush2.bf16.msra.mxu0 0
    %2000 = vmatprep.subr.bf16.mxu0 0
    %2001 = vmatpush2.bf16.msra.mxu0 0
    %2002 = vmatprep.subr.bf16.mxu0 0
    %2003 = vmatpush2.bf16.msra.mxu0 0
    %2004 = vmatprep.mubr.bf16.mxu0 0
    %2005 = vmatmul.mubr.bf16.gmra.mxu0 %v1970
    %v2006 = vpop.f32.mrf.mxu0
    %v2007 = vadd.f32 0.0, %v2006
    %v2008 = vpop.f32.mrf.mxu0
    %v2009 = vpop.f32.mrf.mxu0
    %v2010 = vpop.f32.mrf.mxu0
    %2011 = vdwg.mxu0
    %2013 = vrot.lane.b32.xlu0 %v1964, 32
    %v2014 = vpop.permute.xlu0 %2013
    %v2016 = vsel %vm530, %v2014, 0
    %2018 = vmatprep.subr.bf16.mxu0 0
    %2019 = vmatpush1.bf16.msra.mxu0 0
    %2020 = vmatprep.subr.bf16.mxu0 0
    %2021 = vmatpush1.bf16.msra.mxu0 0
    %2022 = vmatprep.subr.bf16.mxu0 0
    %2023 = vmatpush1.bf16.msra.mxu0 0
    %2024 = vmatprep.subr.bf16.mxu0 0
    %2025 = vmatpush1.bf16.msra.mxu0 0
    %2026 = vmatprep.subr.bf16.mxu0 0
    %2027 = vmatpush1.bf16.msra.mxu0 0
    %2028 = vmatprep.subr.bf16.mxu0 0
    %2029 = vmatpush1.bf16.msra.mxu0 0
    %2030 = vmatprep.subr.bf16.mxu0 0
    %2031 = vmatpush1.bf16.msra.mxu0 %v672
    %2032 = vmatprep.subr.bf16.mxu0 0
    %2033 = vmatpush1.bf16.msra.mxu0 %v671
    %2034 = vmatprep.subr.bf16.mxu0 0
    %2035 = vmatpush2.bf16.msra.mxu0 0
    %2036 = vmatprep.subr.bf16.mxu0 0
    %2037 = vmatpush2.bf16.msra.mxu0 0
    %2038 = vmatprep.subr.bf16.mxu0 0
    %2039 = vmatpush2.bf16.msra.mxu0 0
    %2040 = vmatprep.subr.bf16.mxu0 0
    %2041 = vmatpush2.bf16.msra.mxu0 0
    %2042 = vmatprep.subr.bf16.mxu0 0
    %2043 = vmatpush2.bf16.msra.mxu0 0
    %2044 = vmatprep.subr.bf16.mxu0 0
    %2045 = vmatpush2.bf16.msra.mxu0 0
    %2046 = vmatprep.subr.bf16.mxu0 0
    %2047 = vmatpush2.bf16.msra.mxu0 0
    %2048 = vmatprep.subr.bf16.mxu0 0
    %2049 = vmatpush2.bf16.msra.mxu0 0
    %2050 = vmatprep.mubr.bf16.mxu0 0
    %2051 = vmatmul.mubr.bf16.gmra.mxu0 %v2016
    %v2052 = vpop.f32.mrf.mxu0
    %v2053 = vadd.f32 %v2007, %v2052
    %v2054 = vpop.f32.mrf.mxu0
    %v2055 = vpop.f32.mrf.mxu0
    %v2056 = vpop.f32.mrf.mxu0
    %2057 = vdwg.mxu0
    %v2058 = vadd.f32 %v2053, %v722
    %v2059 = vxor.u32 %v2058, 2147483648
    %v2060 = vmul.f32 %v2059, 1.442695
    %v2061 = vpow.pop %v2060
    %v2062 = vadd.f32 %v2061, 1.0
    %v2063 = vrcp.pop %v2062
    %v2064 = vmul.f32 1.0, %v2063
    %v2065 = vtanh.pop %v2058
    %v2066 = vmul.f32 %v2064, %v1886
    %2068 = vrot.lane.b32.xlu0 %v2065, 64
    %v2069 = vpop.permute.xlu0 %2068
    %v2071 = vmul.f32 %v2064, %v2069
    %2073 = vrot.lane.b32.xlu0 %v2071, 32
    %v2074 = vpop.permute.xlu0 %2073
    %v2076 = vadd.f32 %v2066, %v2074
    %v2077 = vtanh.pop %v2076
    %2079 = vrot.lane.b32.xlu0 %v2077, 64
    %v2080 = vpop.permute.xlu0 %2079
    %v2082 = vmul.f32 %v2064, %v2080
    %2084 = vrot.lane.b32.xlu0 %v2082, 32
    %v2085 = vpop.permute.xlu0 %2084
    %s2087 = scalar_lea.vmem [#allocation2], 14
    %2088 = vst.msk [vmem:[%s2087] sm:$0x3] %vm757, %v2085
    %2090 = vrot.lane.b32.xlu0 %v1963, 32
    %v2091 = vpop.permute.xlu0 %2090
    %2093 = vst.msk [vmem:[#allocation15] sm:$0x3] %vm757, %v2091
    %2095 = vrot.lane.b32.xlu0 %v1957, 96
    %v2096 = vpop.permute.xlu0 %2095
    %2098 = vst.msk [vmem:[#allocation16] sm:$0x3] %vm757, %v2096
    %s2099 = scalar_lea.vmem [#allocation15], 2
    %2100 = vst.msk [vmem:[%s2099] sm:$0x3] %vm757, %v2085
    %2102 = vrot.lane.b32.xlu0 %v2076, 96
    %v2103 = vpop.permute.xlu0 %2102
    %s2105 = scalar_lea.vmem [#allocation16], 2
    %2106 = vst.msk [vmem:[%s2105] sm:$0x3] %vm757, %v2103
    %v2107 = vld [vmem:[#allocation2] sm:$0x3]
    %v2108 = vld [vmem:[#allocation2 + $0x2] sm:$0x3]
    %v2109 = vld [vmem:[#allocation2 + $0x4] sm:$0x3]
    %v2110 = vld [vmem:[#allocation2 + $0x6] sm:$0x3]
    %v2111 = vld [vmem:[#allocation2 + $0x8] sm:$0x3]
    %v2112 = vld [vmem:[#allocation2 + $0xa] sm:$0x3]
    %v2113 = vld [vmem:[#allocation2 + $0xc] sm:$0x3]
    %v2114 = vld [vmem:[#allocation2 + $0xe] sm:$0x3]
    %v2115 = vld [vmem:[%s9] sm:$0x1]
    %v2117 = vlaneseq
    %v2118 = vshrl.u32 %v2117, 7
    %v2119 = vsub.s32 0, %v2118
    %v2120 = vrot.slane %v2115, %v2119
    %v2122 = vmul.f32 %v2107, %v2120
    %v2123 = vmul.f32 %v2108, %v2120
    %v2124 = vmul.f32 %v2109, %v2120
    %v2125 = vmul.f32 %v2110, %v2120
    %v2126 = vmul.f32 %v2111, %v2120
    %v2127 = vmul.f32 %v2112, %v2120
    %v2128 = vmul.f32 %v2113, %v2120
    %v2129 = vmul.f32 %v2114, %v2120
    %v2130 = vsel %vm757, %v2122, 0.0
    %2131 = vadd.xlane.f32.xlu0 %v2130
    %v2132 = vpop.xlane.xlu0 %2131
    %v2133 = vsel %vm757, %v2123, 0.0
    %2134 = vadd.xlane.f32.xlu0 %v2133
    %v2135 = vpop.xlane.xlu0 %2134
    %v2136 = vsel %vm757, %v2124, 0.0
    %2137 = vadd.xlane.f32.xlu0 %v2136
    %v2138 = vpop.xlane.xlu0 %2137
    %v2139 = vsel %vm757, %v2125, 0.0
    %2140 = vadd.xlane.f32.xlu0 %v2139
    %v2141 = vpop.xlane.xlu0 %2140
    %v2142 = vsel %vm757, %v2126, 0.0
    %2143 = vadd.xlane.f32.xlu0 %v2142
    %v2144 = vpop.xlane.xlu0 %2143
    %v2145 = vsel %vm757, %v2127, 0.0
    %2146 = vadd.xlane.f32.xlu0 %v2145
    %v2147 = vpop.xlane.xlu0 %2146
    %v2148 = vsel %vm757, %v2128, 0.0
    %2149 = vadd.xlane.f32.xlu0 %v2148
    %v2150 = vpop.xlane.xlu0 %2149
    %v2151 = vsel %vm757, %v2129, 0.0
    %2152 = vadd.xlane.f32.xlu0 %v2151
    %v2153 = vpop.xlane.xlu0 %2152
    %v2154 = vld [vmem:[#allocation3] sm:$0x1]
    %v2156 = vlaneseq
    %v2157 = vshrl.u32 %v2156, 7
    %v2158 = vsub.s32 0, %v2157
    %v2159 = vrot.slane %v2154, %v2158
    %v2161 = vadd.f32 %v2132, %v2159
    %v2162 = vadd.f32 %v2135, %v2159
    %v2163 = vadd.f32 %v2138, %v2159
    %v2164 = vadd.f32 %v2141, %v2159
    %v2165 = vadd.f32 %v2144, %v2159
    %v2166 = vadd.f32 %v2147, %v2159
    %v2167 = vadd.f32 %v2150, %v2159
    %v2168 = vadd.f32 %v2153, %v2159
    %v2169 = vxor.u32 %v2161, 2147483648
    %v2170 = vxor.u32 %v2162, 2147483648
    %v2171 = vxor.u32 %v2163, 2147483648
    %v2172 = vxor.u32 %v2164, 2147483648
    %v2173 = vxor.u32 %v2165, 2147483648
    %v2174 = vxor.u32 %v2166, 2147483648
    %v2175 = vxor.u32 %v2167, 2147483648
    %v2176 = vxor.u32 %v2168, 2147483648
    %v2177 = vmul.f32 %v2169, 1.442695
    %v2178 = vpow.pop %v2177
    %v2179 = vmul.f32 %v2170, 1.442695
    %v2180 = vpow.pop %v2179
    %v2181 = vmul.f32 %v2171, 1.442695
    %v2182 = vpow.pop %v2181
    %v2183 = vmul.f32 %v2172, 1.442695
    %v2184 = vpow.pop %v2183
    %v2185 = vmul.f32 %v2173, 1.442695
    %v2186 = vpow.pop %v2185
    %v2187 = vmul.f32 %v2174, 1.442695
    %v2188 = vpow.pop %v2187
    %v2189 = vmul.f32 %v2175, 1.442695
    %v2190 = vpow.pop %v2189
    %v2191 = vmul.f32 %v2176, 1.442695
    %v2192 = vpow.pop %v2191
    %v2193 = vadd.f32 %v2178, 1.0
    %v2194 = vadd.f32 %v2180, 1.0
    %v2195 = vadd.f32 %v2182, 1.0
    %v2196 = vadd.f32 %v2184, 1.0
    %v2197 = vadd.f32 %v2186, 1.0
    %v2198 = vadd.f32 %v2188, 1.0
    %v2199 = vadd.f32 %v2190, 1.0
    %v2200 = vadd.f32 %v2192, 1.0
    %v2201 = vrcp.pop %v2193
    %v2202 = vmul.f32 1.0, %v2201
    %v2203 = vrcp.pop %v2194
    %v2204 = vmul.f32 1.0, %v2203
    %v2205 = vrcp.pop %v2195
    %v2206 = vmul.f32 1.0, %v2205
    %v2207 = vrcp.pop %v2196
    %v2208 = vmul.f32 1.0, %v2207
    %v2209 = vrcp.pop %v2197
    %v2210 = vmul.f32 1.0, %v2209
    %v2211 = vrcp.pop %v2198
    %v2212 = vmul.f32 1.0, %v2211
    %v2213 = vrcp.pop %v2199
    %v2214 = vmul.f32 1.0, %v2213
    %v2215 = vrcp.pop %v2200
    %v2216 = vmul.f32 1.0, %v2215
    %vm2217 = vcmask 1024
    %2218 = vst.msk [vmem:[%s11] sm:$0x3] %vm2217, %v2202
    %2219 = vst.msk [vmem:[%s11 + $0x2] sm:$0x3] %vm2217, %v2204
    %2220 = vst.msk [vmem:[%s11 + $0x4] sm:$0x3] %vm2217, %v2206
    %2221 = vst.msk [vmem:[%s11 + $0x6] sm:$0x3] %vm2217, %v2208
    %2222 = vst.msk [vmem:[%s11 + $0x8] sm:$0x3] %vm2217, %v2210
    %2223 = vst.msk [vmem:[%s11 + $0xa] sm:$0x3] %vm2217, %v2212
    %2224 = vst.msk [vmem:[%s11 + $0xc] sm:$0x3] %vm2217, %v2214
    %2225 = vst.msk [vmem:[%s11 + $0xe] sm:$0x3] %vm2217, %v2216
    // Predicated region
    $region70: #{tpu_custom_call.1} parent=1 // pred_check
      _
    $region71: #{tpu_custom_call.1} parent=1 // pred_check_branch
      %2227 = sbr.rel (0) target = $region73
    $region72: #{tpu_custom_call.1} parent=1 // pred_region
      _
    $region73: #{tpu_custom_call.1} parent=1 // pred_fallthru
      _
    // Predicated region
    $region74: #{tpu_custom_call.1} parent=1 // pred_check
      _
    $region75: #{tpu_custom_call.1} parent=1 // pred_check_branch
      %2229 = sbr.rel (0) target = $region77
    $region76: #{tpu_custom_call.1} parent=1 // pred_region
      %s2231 = ssub.s32 64, 64
      %2232 = vsyncadd [#allocation6], %s2231
      %s2233 = sshll.u32 [#allocation15], 4
      %s2234 = int_to_ptr.vmem [resolvable:$true] %s2233
      %2239 = dma.vmem_to_hbm [thread:$0]  %s2234, 64, %s12, [#allocation6], 32, 32, 2
    $region77: #{tpu_custom_call.1} parent=1 // pred_fallthru
      _
    // Predicated region
    $region78: #{tpu_custom_call.1} parent=1 // pred_check
      _
    $region79: #{tpu_custom_call.1} parent=1 // pred_check_branch
      %2241 = sbr.rel (0) target = $region81
    $region80: #{tpu_custom_call.1} parent=1 // pred_region
      %s2243 = ssub.s32 64, 64
      %2244 = vsyncadd [#allocation17], %s2243
      %s2245 = sshll.u32 [#allocation16], 4
      %s2246 = int_to_ptr.vmem [resolvable:$true] %s2245
      %2251 = dma.vmem_to_hbm [thread:$0]  %s2246, 64, %s13, [#allocation17], 32, 32, 2
    $region81: #{tpu_custom_call.1} parent=1 // pred_fallthru
      _
    // Predicated region
    $region82: #{tpu_custom_call.1} parent=1 // pred_check
      _
    $region83: #{tpu_custom_call.1} parent=1 // pred_check_branch
      %2253 = sbr.rel (0) target = $region85
    $region84: #{tpu_custom_call.1} parent=1 // pred_region
      _
    $region85: #{tpu_custom_call.1} parent=1 // pred_fallthru
      _
    // Predicated region
    $region86: #{tpu_custom_call.1} parent=1 // pred_check
      _
    $region87: #{tpu_custom_call.1} parent=1 // pred_check_branch
      %2255 = sbr.rel (0) target = $region89
    $region88: #{tpu_custom_call.1} parent=1 // pred_region
      %2256 = dma.done [#allocation6], 64
    $region89: #{tpu_custom_call.1} parent=1 // pred_fallthru
      _
    // Predicated region
    $region90: #{tpu_custom_call.1} parent=1 // pred_check
      _
    $region91: #{tpu_custom_call.1} parent=1 // pred_check_branch
      %2258 = sbr.rel (0) target = $region93
    $region92: #{tpu_custom_call.1} parent=1 // pred_region
      %2259 = dma.done [#allocation17], 64
    $region93: #{tpu_custom_call.1} parent=1 // pred_fallthru
      _
    %2260 = vsyncpa [#allocation5], 1
    %2261 = vsyncpa [#allocation8], 1
    %2262 = vsyncpa [#allocation11], 1
    %2263 = vsyncpa [#allocation14], 1
    %2264 = vsyncpa [#allocation6], 1
    %2265 = vsyncpa [#allocation17], 1

</llo_original>
